<compile_context>
chip_gen: v6e
topology: v6e:2x2x1
jax: 0.10.0
libtpu: 0.0.40
codegen_flags: <defaults>
</compile_context>

<pallas_src>
import functools

import jax
import jax.numpy as jnp
from jax.experimental import pallas as pl
from jax.experimental.pallas import tpu as pltpu


# ----------------------------------------------------------------------------
# In-kernel helpers (pure jnp on values; everything stays in vregs/VMEM)
# ----------------------------------------------------------------------------
def _ln(x, g, b, eps=1e-5):
    """LayerNorm over the last dim.  x:(R,E)  g,b:(1,E)."""
    mu = jnp.mean(x, axis=-1, keepdims=True)
    d = x - mu
    var = jnp.mean(d * d, axis=-1, keepdims=True)
    return d * jax.lax.rsqrt(var + eps) * g + b


def _mha_2d(x, wqkv, bqkv, wo, bo, num_heads):
    """Multi-head self-attention over the row axis of x:(S,E).

    The 1/sqrt(head_dim) scale is pre-folded into the Q block of wqkv.
    Per-head outputs are folded straight into the output projection
    (concat-free): out = sum_h softmax(q_h k_h^T) v_h @ Wo[h*hd:(h+1)*hd].
    """
    S, E = x.shape
    hd = E // num_heads
    qkv = jnp.dot(x, wqkv, preferred_element_type=jnp.float32) + bqkv   # (S, 3E)
    acc = jnp.zeros((S, E), jnp.float32)
    for h in range(num_heads):
        q = qkv[:, h * hd:(h + 1) * hd]
        k = qkv[:, E + h * hd:E + (h + 1) * hd]
        v = qkv[:, 2 * E + h * hd:2 * E + (h + 1) * hd]
        s = jnp.einsum("sd,td->st", q, k, preferred_element_type=jnp.float32)
        s = s - jnp.max(s, axis=-1, keepdims=True)
        p = jnp.exp(s)
        p = p / jnp.sum(p, axis=-1, keepdims=True)
        o = jnp.dot(p, v, preferred_element_type=jnp.float32)           # (S, hd)
        acc = acc + jnp.dot(o, wo[h * hd:(h + 1) * hd, :],
                            preferred_element_type=jnp.float32)
    return acc + bo


# ----------------------------------------------------------------------------
# Kernel 1: full ViT forward for one (view, batch-element) pair per grid step
# ----------------------------------------------------------------------------
def _vit_view_kernel(*refs, num_layers, num_heads, eps):
    it = iter(refs)
    patches = it.__next__()[...]            # (L, PD)  row 0 is the (zero) cls slot
    w_pe = it.__next__()[...]               # (PD, E)
    emb_bias = it.__next__()[...]            # (L, E)   cls/pos/patch-bias pre-folded
    layer_refs = [[it.__next__() for _ in range(12)] for _ in range(num_layers)]
    lnf_g = it.__next__()[...]
    lnf_b = it.__next__()[...]
    out_ref = it.__next__()                  # (1, E)

    tok = jnp.dot(patches.astype(jnp.float32), w_pe,
                  preferred_element_type=jnp.float32) + emb_bias          # (L, E)

    for lr in layer_refs:
        (ln1_g, ln1_b, wqkv, bqkv, wo, bo,
         ln2_g, ln2_b, w1, b1, w2, b2) = [r[...] for r in lr]
        h = _ln(tok, ln1_g, ln1_b, eps)
        tok = tok + _mha_2d(h, wqkv, bqkv, wo, bo, num_heads)
        h2 = _ln(tok, ln2_g, ln2_b, eps)
        # TODO(synk): jax.nn.gelu default is the tanh approximation (torch GELU is erf).
        m = jax.nn.gelu(jnp.dot(h2, w1, preferred_element_type=jnp.float32) + b1)
        m = jnp.dot(m, w2, preferred_element_type=jnp.float32) + b2
        tok = tok + m

    tok = _ln(tok, lnf_g, lnf_b, eps)
    out_ref[...] = tok[0:1, :].astype(out_ref.dtype)                     # cls token


def vit_forward_batched(patches_aug, vit_p, *, num_heads, num_layers, eps=1e-5):
    """patches_aug: (V, B, L, PD) with row 0 of L zeroed (cls slot). -> (V, B, E)."""
    V, B, L, PD = patches_aug.shape
    E = vit_p["W_pe"].shape[-1]

    def wspec(arr):
        _, r, c = arr.shape
        return pl.BlockSpec((None, r, c), lambda v, b: (v, 0, 0))

    args = [patches_aug, vit_p["W_pe"], vit_p["embed_bias"]]
    in_specs = [
        pl.BlockSpec((None, None, L, PD), lambda v, b: (v, b, 0, 0)),
        wspec(vit_p["W_pe"]),
        wspec(vit_p["embed_bias"]),
    ]
    layer_names = ("ln1_g", "ln1_b", "wqkv", "bqkv", "wo", "bo",
                   "ln2_g", "ln2_b", "Wm1", "bm1", "Wm2", "bm2")
    for lyr in vit_p["layers"]:
        for name in layer_names:
            args.append(lyr[name])
            in_specs.append(wspec(lyr[name]))
    for name in ("lnf_g", "lnf_b"):
        args.append(vit_p[name])
        in_specs.append(wspec(vit_p[name]))

    out = pl.pallas_call(
        functools.partial(_vit_view_kernel, num_layers=num_layers,
                          num_heads=num_heads, eps=eps),
        out_shape=jax.ShapeDtypeStruct((V, B, 1, E), jnp.float32),
        grid=(V, B),
        in_specs=in_specs,
        out_specs=pl.BlockSpec((None, None, 1, E), lambda v, b: (v, b, 0, 0)),
        compiler_params=pltpu.CompilerParams(
            dimension_semantics=("parallel", "parallel")),
    )(*args)
    return out.reshape(V, B, E)


# ----------------------------------------------------------------------------
# Kernel 2: fusion self-attention (over the batch axis, per PyTorch seq-first
# MultiheadAttention quirk) + mean over views + MLP head — one pallas_call.
# ----------------------------------------------------------------------------
def _fusion_mlp_kernel(*refs, num_views, num_heads, num_mlp):
    it = iter(refs)
    x_ref = it.__next__()                    # (V, B, E)
    wqkv = it.__next__()[...]
    bqkv = it.__next__()[...]
    wo = it.__next__()[...]
    bo = it.__next__()[...]
    mlp = [(it.__next__()[...], it.__next__()[...]) for _ in range(num_mlp)]
    out_ref = it.__next__()                  # (B, out_dim)

    _, B, E = x_ref.shape
    acc = jnp.zeros((B, E), jnp.float32)
    for v in range(num_views):
        xv = x_ref[v].astype(jnp.float32)    # (B, E): attention batch = view,
        acc = acc + _mha_2d(xv, wqkv, bqkv, wo, bo, num_heads)  # seq = real batch
    y = acc * (1.0 / num_views)              # mean over views

    for i, (w, b) in enumerate(mlp):
        y = jnp.dot(y, w, preferred_element_type=jnp.float32) + b
        if i < num_mlp - 1:
            y = jnp.maximum(y, 0.0)
    out_ref[...] = y.astype(out_ref.dtype)


def fusion_mlp(view_out, fusion_p, mlp_p, *, num_heads=4):
    V, B, E = view_out.shape
    out_dim = mlp_p[-1][0].shape[1]

    args = [view_out, fusion_p["wqkv"], fusion_p["bqkv"],
            fusion_p["wo"], fusion_p["bo"]]
    in_specs = [
        pl.BlockSpec((V, B, E), lambda i: (0, 0, 0)),
        pl.BlockSpec(fusion_p["wqkv"].shape, lambda i: (0, 0)),
        pl.BlockSpec(fusion_p["bqkv"].shape, lambda i: (0, 0)),
        pl.BlockSpec(fusion_p["wo"].shape, lambda i: (0, 0)),
        pl.BlockSpec(fusion_p["bo"].shape, lambda i: (0, 0)),
    ]
    for w, b in mlp_p:
        args.extend([w, b])
        in_specs.extend([pl.BlockSpec(w.shape, lambda i: (0, 0)),
                         pl.BlockSpec(b.shape, lambda i: (0, 0))])

    return pl.pallas_call(
        functools.partial(_fusion_mlp_kernel, num_views=V,
                          num_heads=num_heads, num_mlp=len(mlp_p)),
        out_shape=jax.ShapeDtypeStruct((B, out_dim), jnp.float32),
        grid=(1,),
        in_specs=in_specs,
        out_specs=pl.BlockSpec((B, out_dim), lambda i: (0, 0)),
    )(*args)


# ----------------------------------------------------------------------------
# Host-side glue (layout plumbing only)
# ----------------------------------------------------------------------------
def _extract_patches(x_nchw, patch_size):
    B, C, H, W = x_nchw.shape
    ph, pw = H // patch_size, W // patch_size
    p = x_nchw.reshape(B, C, ph, patch_size, pw, patch_size)
    p = jnp.transpose(p, (0, 2, 4, 1, 3, 5))
    return p.reshape(B, ph * pw, C * patch_size * patch_size)


def forward(params, x):
    # x: (B, C, H, W), NCHW as in the PyTorch module (cube so all views match).
    ps = params["patch_size"]
    x1 = jnp.transpose(x, (0, 3, 1, 2))
    x2 = jnp.transpose(x, (0, 2, 1, 3))
    x3 = x
    patches = jnp.stack([_extract_patches(xi, ps) for xi in (x1, x2, x3)],
                        axis=0)                                  # (3, B, P, PD)
    V, B, P, PD = patches.shape
    patches_aug = jnp.concatenate(
        [jnp.zeros((V, B, 1, PD), patches.dtype), patches], axis=2)  # cls slot row

    view_out = vit_forward_batched(patches_aug, params["vit"],
                                   num_heads=params["num_heads"],
                                   num_layers=params["num_layers"])  # (3, B, E)
    return fusion_mlp(view_out, params["fusion"], params["mlp"], num_heads=4)


# ----------------------------------------------------------------------------
# Deterministic parameter initialization (weights pre-transposed, QKV fused,
# attention scale folded into Wq, cls/pos/bias folded into embed_bias).
# ----------------------------------------------------------------------------
def _dense(key, shape, scale=0.02):
    return (scale * jax.random.normal(key, shape)).astype(jnp.float32)


def init_model_params(key, *, emb_dim=32, mlp_dim=64, num_layers=1, num_heads=4,
                      image_size=8, patch_size=4, num_channels=8,
                      mlp_dims=(32, 16, 4)):
    PD = num_channels * patch_size * patch_size
    P = (image_size // patch_size) ** 2
    L = P + 1
    hd = emb_dim // num_heads
    qscale = 1.0 / (float(hd) ** 0.5)

    def vit_params(k):
        ks = iter(jax.random.split(k, 4 + 8 * num_layers))
        W_pe = _dense(next(ks), (PD, emb_dim))
        b_pe = jnp.zeros((1, emb_dim), jnp.float32)
        cls = _dense(next(ks), (1, emb_dim))
        pos = _dense(next(ks), (L, emb_dim))
        embed_bias = jnp.concatenate([cls, jnp.tile(b_pe, (P, 1))], axis=0) + pos
        layers = []
        for _ in range(num_layers):
            wq = _dense(next(ks), (emb_dim, emb_dim)) * qscale   # scale folded in
            wk = _dense(next(ks), (emb_dim, emb_dim))
            wv = _dense(next(ks), (emb_dim, emb_dim))
            layers.append(dict(
                ln1_g=jnp.ones((1, emb_dim), jnp.float32),
                ln1_b=jnp.zeros((1, emb_dim), jnp.float32),
                wqkv=jnp.concatenate([wq, wk, wv], axis=1),
                bqkv=jnp.zeros((1, 3 * emb_dim), jnp.float32),
                wo=_dense(next(ks), (emb_dim, emb_dim)),
                bo=jnp.zeros((1, emb_dim), jnp.float32),
                ln2_g=jnp.ones((1, emb_dim), jnp.float32),
                ln2_b=jnp.zeros((1, emb_dim), jnp.float32),
                Wm1=_dense(next(ks), (emb_dim, mlp_dim)),
                bm1=jnp.zeros((1, mlp_dim), jnp.float32),
                Wm2=_dense(next(ks), (mlp_dim, emb_dim)),
                bm2=jnp.zeros((1, emb_dim), jnp.float32),
            ))
        return dict(W_pe=W_pe, embed_bias=embed_bias, layers=layers,
                    lnf_g=jnp.ones((1, emb_dim), jnp.float32),
                    lnf_b=jnp.zeros((1, emb_dim), jnp.float32))

    keys = jax.random.split(key, 5)
    vits = [vit_params(keys[i]) for i in range(3)]
    vit_stacked = jax.tree_util.tree_map(lambda *a: jnp.stack(a, axis=0), *vits)

    fk = jax.random.split(keys[3], 4)
    wq = _dense(fk[0], (emb_dim, emb_dim)) * qscale
    wk = _dense(fk[1], (emb_dim, emb_dim))
    wv = _dense(fk[2], (emb_dim, emb_dim))
    fusion = dict(
        wqkv=jnp.concatenate([wq, wk, wv], axis=1),
        bqkv=jnp.zeros((1, 3 * emb_dim), jnp.float32),
        wo=_dense(fk[3], (emb_dim, emb_dim)),
        bo=jnp.zeros((1, emb_dim), jnp.float32),
    )

    mlp = []
    mk = jax.random.split(keys[4], len(mlp_dims) - 1)
    for i in range(len(mlp_dims) - 1):
        mlp.append((_dense(mk[i], (mlp_dims[i], mlp_dims[i + 1])),
                    jnp.zeros((1, mlp_dims[i + 1]), jnp.float32)))

    return dict(patch_size=patch_size, num_heads=num_heads, num_layers=num_layers,
                vit=vit_stacked, fusion=fusion, mlp=mlp)


# ----------------------------------------------------------------------------
if __name__ == "__main__":
    key = jax.random.PRNGKey(0)
    kx, kp = jax.random.split(key)

    # Cube-shaped input so all three permutations feed identically-shaped ViTs:
    # image_sizes=[8,8,8], patch_sizes=[4,4,4], num_channals=[8,8,8],
    # vit_args={'emb_dim':32, 'num_heads':4, ...}, mlp_dims=[32,16,4].
    B, S = 2, 8
    x = jax.random.normal(kx, (B, S, S, S), jnp.float32)   # (B, C, H, W)

    params = init_model_params(kp)
    out = forward(params, x)
    out = jax.block_until_ready(out)
    assert out.shape == (B, 4), out.shape
    print("KERNEL_OK")
</pallas_src>

<mosaic_0001>
module attributes {stable_mosaic.version = 11 : i64} {
  func.func @_vit_view_kernel(%arg0: i32, %arg1: i32, %arg2: memref<1x1x5x128xf32, #tpu.memory_space<vmem>>, %arg3: memref<1x128x32xf32, #tpu.memory_space<vmem>>, %arg4: memref<1x5x32xf32, #tpu.memory_space<vmem>>, %arg5: memref<1x1x32xf32, #tpu.memory_space<vmem>>, %arg6: memref<1x1x32xf32, #tpu.memory_space<vmem>>, %arg7: memref<1x32x96xf32, #tpu.memory_space<vmem>>, %arg8: memref<1x1x96xf32, #tpu.memory_space<vmem>>, %arg9: memref<1x32x32xf32, #tpu.memory_space<vmem>>, %arg10: memref<1x1x32xf32, #tpu.memory_space<vmem>>, %arg11: memref<1x1x32xf32, #tpu.memory_space<vmem>>, %arg12: memref<1x1x32xf32, #tpu.memory_space<vmem>>, %arg13: memref<1x32x64xf32, #tpu.memory_space<vmem>>, %arg14: memref<1x1x64xf32, #tpu.memory_space<vmem>>, %arg15: memref<1x64x32xf32, #tpu.memory_space<vmem>>, %arg16: memref<1x1x32xf32, #tpu.memory_space<vmem>>, %arg17: memref<1x1x32xf32, #tpu.memory_space<vmem>>, %arg18: memref<1x1x32xf32, #tpu.memory_space<vmem>>, %arg19: memref<1x1x1x32xf32, #tpu.memory_space<vmem>>) attributes {dimension_semantics = [#tpu.dimension_semantics<parallel>, #tpu.dimension_semantics<parallel>], iteration_bounds = array<i64: 3, 2>, scalar_prefetch = 0 : i64, scratch_operands = 0 : i64, tpu.core_type = #tpu.core_type<tc>, window_params = [{transform_indices = @transform_0, window_bounds = array<i64: 1, 1, 5, 128>}, {transform_indices = @transform_1, window_bounds = array<i64: 1, 128, 32>}, {transform_indices = @transform_2, window_bounds = array<i64: 1, 5, 32>}, {transform_indices = @transform_3, window_bounds = array<i64: 1, 1, 32>}, {transform_indices = @transform_4, window_bounds = array<i64: 1, 1, 32>}, {transform_indices = @transform_5, window_bounds = array<i64: 1, 32, 96>}, {transform_indices = @transform_6, window_bounds = array<i64: 1, 1, 96>}, {transform_indices = @transform_7, window_bounds = array<i64: 1, 32, 32>}, {transform_indices = @transform_8, window_bounds = array<i64: 1, 1, 32>}, {transform_indices = @transform_9, window_bounds = array<i64: 1, 1, 32>}, {transform_indices = @transform_10, window_bounds = array<i64: 1, 1, 32>}, {transform_indices = @transform_11, window_bounds = array<i64: 1, 32, 64>}, {transform_indices = @transform_12, window_bounds = array<i64: 1, 1, 64>}, {transform_indices = @transform_13, window_bounds = array<i64: 1, 64, 32>}, {transform_indices = @transform_14, window_bounds = array<i64: 1, 1, 32>}, {transform_indices = @transform_15, window_bounds = array<i64: 1, 1, 32>}, {transform_indices = @transform_16, window_bounds = array<i64: 1, 1, 32>}, {transform_indices = @transform_17, window_bounds = array<i64: 1, 1, 1, 32>}]} {
    %c0 = arith.constant 0 : index
    %c0_0 = arith.constant 0 : index
    %c0_1 = arith.constant 0 : index
    %c0_2 = arith.constant 0 : index
    %0 = vector.load %arg2[%c0, %c0_0, %c0_1, %c0_2] : memref<1x1x5x128xf32, #tpu.memory_space<vmem>>, vector<1x1x5x128xf32>
    %1 = vector.shape_cast %0 : vector<1x1x5x128xf32> to vector<5x128xf32>
    %c0_3 = arith.constant 0 : index
    %c0_4 = arith.constant 0 : index
    %c0_5 = arith.constant 0 : index
    %2 = vector.load %arg3[%c0_3, %c0_4, %c0_5] : memref<1x128x32xf32, #tpu.memory_space<vmem>>, vector<1x128x32xf32>
    %3 = vector.shape_cast %2 : vector<1x128x32xf32> to vector<128x32xf32>
    %c0_6 = arith.constant 0 : index
    %c0_7 = arith.constant 0 : index
    %c0_8 = arith.constant 0 : index
    %4 = vector.load %arg4[%c0_6, %c0_7, %c0_8] : memref<1x5x32xf32, #tpu.memory_space<vmem>>, vector<1x5x32xf32>
    %5 = vector.shape_cast %4 : vector<1x5x32xf32> to vector<5x32xf32>
    %c0_9 = arith.constant 0 : index
    %c0_10 = arith.constant 0 : index
    %c0_11 = arith.constant 0 : index
    %6 = vector.load %arg17[%c0_9, %c0_10, %c0_11] : memref<1x1x32xf32, #tpu.memory_space<vmem>>, vector<1x1x32xf32>
    %7 = vector.shape_cast %6 : vector<1x1x32xf32> to vector<1x32xf32>
    %c0_12 = arith.constant 0 : index
    %c0_13 = arith.constant 0 : index
    %c0_14 = arith.constant 0 : index
    %8 = vector.load %arg18[%c0_12, %c0_13, %c0_14] : memref<1x1x32xf32, #tpu.memory_space<vmem>>, vector<1x1x32xf32>
    %9 = vector.shape_cast %8 : vector<1x1x32xf32> to vector<1x32xf32>
    %cst = arith.constant dense<0.000000e+00> : vector<5x32xf32>
    %10 = tpu.matmul %1, %3, %cst {dimension_numbers = #tpu.dot_dimension_numbers<[1], [0], [0], [1], [0, 0, 1, 1], [], []>} : vector<5x128xf32>, vector<128x32xf32>, vector<5x32xf32> -> vector<5x32xf32>
    %11 = arith.addf %10, %5 : vector<5x32xf32>
    %c0_15 = arith.constant 0 : index
    %c0_16 = arith.constant 0 : index
    %c0_17 = arith.constant 0 : index
    %12 = vector.load %arg5[%c0_15, %c0_16, %c0_17] : memref<1x1x32xf32, #tpu.memory_space<vmem>>, vector<1x1x32xf32>
    %13 = vector.shape_cast %12 : vector<1x1x32xf32> to vector<1x32xf32>
    %c0_18 = arith.constant 0 : index
    %c0_19 = arith.constant 0 : index
    %c0_20 = arith.constant 0 : index
    %14 = vector.load %arg6[%c0_18, %c0_19, %c0_20] : memref<1x1x32xf32, #tpu.memory_space<vmem>>, vector<1x1x32xf32>
    %15 = vector.shape_cast %14 : vector<1x1x32xf32> to vector<1x32xf32>
    %c0_21 = arith.constant 0 : index
    %c0_22 = arith.constant 0 : index
    %c0_23 = arith.constant 0 : index
    %16 = vector.load %arg7[%c0_21, %c0_22, %c0_23] : memref<1x32x96xf32, #tpu.memory_space<vmem>>, vector<1x32x96xf32>
    %17 = vector.shape_cast %16 : vector<1x32x96xf32> to vector<32x96xf32>
    %c0_24 = arith.constant 0 : index
    %c0_25 = arith.constant 0 : index
    %c0_26 = arith.constant 0 : index
    %18 = vector.load %arg8[%c0_24, %c0_25, %c0_26] : memref<1x1x96xf32, #tpu.memory_space<vmem>>, vector<1x1x96xf32>
    %19 = vector.shape_cast %18 : vector<1x1x96xf32> to vector<1x96xf32>
    %c0_27 = arith.constant 0 : index
    %c0_28 = arith.constant 0 : index
    %c0_29 = arith.constant 0 : index
    %20 = vector.load %arg9[%c0_27, %c0_28, %c0_29] : memref<1x32x32xf32, #tpu.memory_space<vmem>>, vector<1x32x32xf32>
    %21 = vector.shape_cast %20 : vector<1x32x32xf32> to vector<32x32xf32>
    %c0_30 = arith.constant 0 : index
    %c0_31 = arith.constant 0 : index
    %c0_32 = arith.constant 0 : index
    %22 = vector.load %arg10[%c0_30, %c0_31, %c0_32] : memref<1x1x32xf32, #tpu.memory_space<vmem>>, vector<1x1x32xf32>
    %23 = vector.shape_cast %22 : vector<1x1x32xf32> to vector<1x32xf32>
    %c0_33 = arith.constant 0 : index
    %c0_34 = arith.constant 0 : index
    %c0_35 = arith.constant 0 : index
    %24 = vector.load %arg11[%c0_33, %c0_34, %c0_35] : memref<1x1x32xf32, #tpu.memory_space<vmem>>, vector<1x1x32xf32>
    %25 = vector.shape_cast %24 : vector<1x1x32xf32> to vector<1x32xf32>
    %c0_36 = arith.constant 0 : index
    %c0_37 = arith.constant 0 : index
    %c0_38 = arith.constant 0 : index
    %26 = vector.load %arg12[%c0_36, %c0_37, %c0_38] : memref<1x1x32xf32, #tpu.memory_space<vmem>>, vector<1x1x32xf32>
    %27 = vector.shape_cast %26 : vector<1x1x32xf32> to vector<1x32xf32>
    %c0_39 = arith.constant 0 : index
    %c0_40 = arith.constant 0 : index
    %c0_41 = arith.constant 0 : index
    %28 = vector.load %arg13[%c0_39, %c0_40, %c0_41] : memref<1x32x64xf32, #tpu.memory_space<vmem>>, vector<1x32x64xf32>
    %29 = vector.shape_cast %28 : vector<1x32x64xf32> to vector<32x64xf32>
    %c0_42 = arith.constant 0 : index
    %c0_43 = arith.constant 0 : index
    %c0_44 = arith.constant 0 : index
    %30 = vector.load %arg14[%c0_42, %c0_43, %c0_44] : memref<1x1x64xf32, #tpu.memory_space<vmem>>, vector<1x1x64xf32>
    %31 = vector.shape_cast %30 : vector<1x1x64xf32> to vector<1x64xf32>
    %c0_45 = arith.constant 0 : index
    %c0_46 = arith.constant 0 : index
    %c0_47 = arith.constant 0 : index
    %32 = vector.load %arg15[%c0_45, %c0_46, %c0_47] : memref<1x64x32xf32, #tpu.memory_space<vmem>>, vector<1x64x32xf32>
    %33 = vector.shape_cast %32 : vector<1x64x32xf32> to vector<64x32xf32>
    %c0_48 = arith.constant 0 : index
    %c0_49 = arith.constant 0 : index
    %c0_50 = arith.constant 0 : index
    %34 = vector.load %arg16[%c0_48, %c0_49, %c0_50] : memref<1x1x32xf32, #tpu.memory_space<vmem>>, vector<1x1x32xf32>
    %35 = vector.shape_cast %34 : vector<1x1x32xf32> to vector<1x32xf32>
    %cst_51 = arith.constant dense<0.000000e+00> : vector<5xf32>
    %36 = vector.multi_reduction <add>, %11, %cst_51 [1] : vector<5x32xf32> to vector<5xf32>
    %37 = vector.shape_cast %36 : vector<5xf32> to vector<5x1xf32>
    %cst_52 = arith.constant 3.200000e+01 : f32
    %38 = vector.broadcast %cst_52 : f32 to vector<5x1xf32>
    %39 = arith.divf %37, %38 : vector<5x1xf32>
    %40 = vector.broadcast %39 : vector<5x1xf32> to vector<5x32xf32>
    %41 = arith.subf %11, %40 : vector<5x32xf32>
    %42 = arith.mulf %41, %41 : vector<5x32xf32>
    %cst_53 = arith.constant dense<0.000000e+00> : vector<5xf32>
    %43 = vector.multi_reduction <add>, %42, %cst_53 [1] : vector<5x32xf32> to vector<5xf32>
    %44 = vector.shape_cast %43 : vector<5xf32> to vector<5x1xf32>
    %cst_54 = arith.constant 3.200000e+01 : f32
    %45 = vector.broadcast %cst_54 : f32 to vector<5x1xf32>
    %46 = arith.divf %44, %45 : vector<5x1xf32>
    %cst_55 = arith.constant 9.99999974E-6 : f32
    %47 = vector.broadcast %cst_55 : f32 to vector<5x1xf32>
    %48 = arith.addf %46, %47 : vector<5x1xf32>
    %49 = math.rsqrt %48 : vector<5x1xf32>
    %50 = vector.broadcast %49 : vector<5x1xf32> to vector<5x32xf32>
    %51 = arith.mulf %41, %50 : vector<5x32xf32>
    %52 = vector.broadcast %13 : vector<1x32xf32> to vector<5x32xf32>
    %53 = arith.mulf %51, %52 : vector<5x32xf32>
    %54 = vector.broadcast %15 : vector<1x32xf32> to vector<5x32xf32>
    %55 = arith.addf %53, %54 : vector<5x32xf32>
    %cst_56 = arith.constant dense<0.000000e+00> : vector<5x96xf32>
    %56 = tpu.matmul %55, %17, %cst_56 {dimension_numbers = #tpu.dot_dimension_numbers<[1], [0], [0], [1], [0, 0, 1, 1], [], []>} : vector<5x32xf32>, vector<32x96xf32>, vector<5x96xf32> -> vector<5x96xf32>
    %57 = vector.broadcast %19 : vector<1x96xf32> to vector<5x96xf32>
    %58 = arith.addf %56, %57 : vector<5x96xf32>
    %cst_57 = arith.constant 0.000000e+00 : f32
    %59 = vector.broadcast %cst_57 : f32 to vector<5x32xf32>
    %60 = vector.extract_strided_slice %58 {offsets = [0, 0], sizes = [5, 8], strides = [1, 1]} : vector<5x96xf32> to vector<5x8xf32>
    %61 = vector.extract_strided_slice %58 {offsets = [0, 32], sizes = [5, 8], strides = [1, 1]} : vector<5x96xf32> to vector<5x8xf32>
    %62 = vector.extract_strided_slice %58 {offsets = [0, 64], sizes = [5, 8], strides = [1, 1]} : vector<5x96xf32> to vector<5x8xf32>
    "tpu.trace_start"() <{level = 10 : i32, message = "sd,td->st"}> : () -> ()
    %cst_58 = arith.constant dense<0.000000e+00> : vector<5x5xf32>
    %63 = tpu.matmul %60, %61, %cst_58 {dimension_numbers = #tpu.dot_dimension_numbers<[1], [1], [0], [0], [0, 0, 1, 0], [], []>} : vector<5x8xf32>, vector<5x8xf32>, vector<5x5xf32> -> vector<5x5xf32>
    "tpu.trace_stop"() : () -> ()
    %cst_59 = arith.constant dense<0xFF800000> : vector<5xf32>
    %64 = vector.multi_reduction <maximumf>, %63, %cst_59 [1] : vector<5x5xf32> to vector<5xf32>
    %65 = vector.shape_cast %64 : vector<5xf32> to vector<5x1xf32>
    %66 = vector.broadcast %65 : vector<5x1xf32> to vector<5x5xf32>
    %67 = arith.subf %63, %66 : vector<5x5xf32>
    %68 = math.exp %67 : vector<5x5xf32>
    %cst_60 = arith.constant dense<0.000000e+00> : vector<5xf32>
    %69 = vector.multi_reduction <add>, %68, %cst_60 [1] : vector<5x5xf32> to vector<5xf32>
    %70 = vector.shape_cast %69 : vector<5xf32> to vector<5x1xf32>
    %71 = vector.broadcast %70 : vector<5x1xf32> to vector<5x5xf32>
    %72 = arith.divf %68, %71 : vector<5x5xf32>
    %cst_61 = arith.constant dense<0.000000e+00> : vector<5x8xf32>
    %73 = tpu.matmul %72, %62, %cst_61 {dimension_numbers = #tpu.dot_dimension_numbers<[1], [0], [0], [1], [0, 0, 1, 1], [], []>} : vector<5x5xf32>, vector<5x8xf32>, vector<5x8xf32> -> vector<5x8xf32>
    %74 = vector.extract_strided_slice %21 {offsets = [0, 0], sizes = [8, 32], strides = [1, 1]} : vector<32x32xf32> to vector<8x32xf32>
    %cst_62 = arith.constant dense<0.000000e+00> : vector<5x32xf32>
    %75 = tpu.matmul %73, %74, %cst_62 {dimension_numbers = #tpu.dot_dimension_numbers<[1], [0], [0], [1], [0, 0, 1, 1], [], []>} : vector<5x8xf32>, vector<8x32xf32>, vector<5x32xf32> -> vector<5x32xf32>
    %76 = arith.addf %59, %75 : vector<5x32xf32>
    %77 = vector.extract_strided_slice %58 {offsets = [0, 8], sizes = [5, 8], strides = [1, 1]} : vector<5x96xf32> to vector<5x8xf32>
    %78 = vector.extract_strided_slice %58 {offsets = [0, 40], sizes = [5, 8], strides = [1, 1]} : vector<5x96xf32> to vector<5x8xf32>
    %79 = vector.extract_strided_slice %58 {offsets = [0, 72], sizes = [5, 8], strides = [1, 1]} : vector<5x96xf32> to vector<5x8xf32>
    "tpu.trace_start"() <{level = 10 : i32, message = "sd,td->st"}> : () -> ()
    %cst_63 = arith.constant dense<0.000000e+00> : vector<5x5xf32>
    %80 = tpu.matmul %77, %78, %cst_63 {dimension_numbers = #tpu.dot_dimension_numbers<[1], [1], [0], [0], [0, 0, 1, 0], [], []>} : vector<5x8xf32>, vector<5x8xf32>, vector<5x5xf32> -> vector<5x5xf32>
    "tpu.trace_stop"() : () -> ()
    %cst_64 = arith.constant dense<0xFF800000> : vector<5xf32>
    %81 = vector.multi_reduction <maximumf>, %80, %cst_64 [1] : vector<5x5xf32> to vector<5xf32>
    %82 = vector.shape_cast %81 : vector<5xf32> to vector<5x1xf32>
    %83 = vector.broadcast %82 : vector<5x1xf32> to vector<5x5xf32>
    %84 = arith.subf %80, %83 : vector<5x5xf32>
    %85 = math.exp %84 : vector<5x5xf32>
    %cst_65 = arith.constant dense<0.000000e+00> : vector<5xf32>
    %86 = vector.multi_reduction <add>, %85, %cst_65 [1] : vector<5x5xf32> to vector<5xf32>
    %87 = vector.shape_cast %86 : vector<5xf32> to vector<5x1xf32>
    %88 = vector.broadcast %87 : vector<5x1xf32> to vector<5x5xf32>
    %89 = arith.divf %85, %88 : vector<5x5xf32>
    %cst_66 = arith.constant dense<0.000000e+00> : vector<5x8xf32>
    %90 = tpu.matmul %89, %79, %cst_66 {dimension_numbers = #tpu.dot_dimension_numbers<[1], [0], [0], [1], [0, 0, 1, 1], [], []>} : vector<5x5xf32>, vector<5x8xf32>, vector<5x8xf32> -> vector<5x8xf32>
    %91 = vector.extract_strided_slice %21 {offsets = [8, 0], sizes = [8, 32], strides = [1, 1]} : vector<32x32xf32> to vector<8x32xf32>
    %cst_67 = arith.constant dense<0.000000e+00> : vector<5x32xf32>
    %92 = tpu.matmul %90, %91, %cst_67 {dimension_numbers = #tpu.dot_dimension_numbers<[1], [0], [0], [1], [0, 0, 1, 1], [], []>} : vector<5x8xf32>, vector<8x32xf32>, vector<5x32xf32> -> vector<5x32xf32>
    %93 = arith.addf %76, %92 : vector<5x32xf32>
    %94 = vector.extract_strided_slice %58 {offsets = [0, 16], sizes = [5, 8], strides = [1, 1]} : vector<5x96xf32> to vector<5x8xf32>
    %95 = vector.extract_strided_slice %58 {offsets = [0, 48], sizes = [5, 8], strides = [1, 1]} : vector<5x96xf32> to vector<5x8xf32>
    %96 = vector.extract_strided_slice %58 {offsets = [0, 80], sizes = [5, 8], strides = [1, 1]} : vector<5x96xf32> to vector<5x8xf32>
    "tpu.trace_start"() <{level = 10 : i32, message = "sd,td->st"}> : () -> ()
    %cst_68 = arith.constant dense<0.000000e+00> : vector<5x5xf32>
    %97 = tpu.matmul %94, %95, %cst_68 {dimension_numbers = #tpu.dot_dimension_numbers<[1], [1], [0], [0], [0, 0, 1, 0], [], []>} : vector<5x8xf32>, vector<5x8xf32>, vector<5x5xf32> -> vector<5x5xf32>
    "tpu.trace_stop"() : () -> ()
    %cst_69 = arith.constant dense<0xFF800000> : vector<5xf32>
    %98 = vector.multi_reduction <maximumf>, %97, %cst_69 [1] : vector<5x5xf32> to vector<5xf32>
    %99 = vector.shape_cast %98 : vector<5xf32> to vector<5x1xf32>
    %100 = vector.broadcast %99 : vector<5x1xf32> to vector<5x5xf32>
    %101 = arith.subf %97, %100 : vector<5x5xf32>
    %102 = math.exp %101 : vector<5x5xf32>
    %cst_70 = arith.constant dense<0.000000e+00> : vector<5xf32>
    %103 = vector.multi_reduction <add>, %102, %cst_70 [1] : vector<5x5xf32> to vector<5xf32>
    %104 = vector.shape_cast %103 : vector<5xf32> to vector<5x1xf32>
    %105 = vector.broadcast %104 : vector<5x1xf32> to vector<5x5xf32>
    %106 = arith.divf %102, %105 : vector<5x5xf32>
    %cst_71 = arith.constant dense<0.000000e+00> : vector<5x8xf32>
    %107 = tpu.matmul %106, %96, %cst_71 {dimension_numbers = #tpu.dot_dimension_numbers<[1], [0], [0], [1], [0, 0, 1, 1], [], []>} : vector<5x5xf32>, vector<5x8xf32>, vector<5x8xf32> -> vector<5x8xf32>
    %108 = vector.extract_strided_slice %21 {offsets = [16, 0], sizes = [8, 32], strides = [1, 1]} : vector<32x32xf32> to vector<8x32xf32>
    %cst_72 = arith.constant dense<0.000000e+00> : vector<5x32xf32>
    %109 = tpu.matmul %107, %108, %cst_72 {dimension_numbers = #tpu.dot_dimension_numbers<[1], [0], [0], [1], [0, 0, 1, 1], [], []>} : vector<5x8xf32>, vector<8x32xf32>, vector<5x32xf32> -> vector<5x32xf32>
    %110 = arith.addf %93, %109 : vector<5x32xf32>
    %111 = vector.extract_strided_slice %58 {offsets = [0, 24], sizes = [5, 8], strides = [1, 1]} : vector<5x96xf32> to vector<5x8xf32>
    %112 = vector.extract_strided_slice %58 {offsets = [0, 56], sizes = [5, 8], strides = [1, 1]} : vector<5x96xf32> to vector<5x8xf32>
    %113 = vector.extract_strided_slice %58 {offsets = [0, 88], sizes = [5, 8], strides = [1, 1]} : vector<5x96xf32> to vector<5x8xf32>
    "tpu.trace_start"() <{level = 10 : i32, message = "sd,td->st"}> : () -> ()
    %cst_73 = arith.constant dense<0.000000e+00> : vector<5x5xf32>
    %114 = tpu.matmul %111, %112, %cst_73 {dimension_numbers = #tpu.dot_dimension_numbers<[1], [1], [0], [0], [0, 0, 1, 0], [], []>} : vector<5x8xf32>, vector<5x8xf32>, vector<5x5xf32> -> vector<5x5xf32>
    "tpu.trace_stop"() : () -> ()
    %cst_74 = arith.constant dense<0xFF800000> : vector<5xf32>
    %115 = vector.multi_reduction <maximumf>, %114, %cst_74 [1] : vector<5x5xf32> to vector<5xf32>
    %116 = vector.shape_cast %115 : vector<5xf32> to vector<5x1xf32>
    %117 = vector.broadcast %116 : vector<5x1xf32> to vector<5x5xf32>
    %118 = arith.subf %114, %117 : vector<5x5xf32>
    %119 = math.exp %118 : vector<5x5xf32>
    %cst_75 = arith.constant dense<0.000000e+00> : vector<5xf32>
    %120 = vector.multi_reduction <add>, %119, %cst_75 [1] : vector<5x5xf32> to vector<5xf32>
    %121 = vector.shape_cast %120 : vector<5xf32> to vector<5x1xf32>
    %122 = vector.broadcast %121 : vector<5x1xf32> to vector<5x5xf32>
    %123 = arith.divf %119, %122 : vector<5x5xf32>
    %cst_76 = arith.constant dense<0.000000e+00> : vector<5x8xf32>
    %124 = tpu.matmul %123, %113, %cst_76 {dimension_numbers = #tpu.dot_dimension_numbers<[1], [0], [0], [1], [0, 0, 1, 1], [], []>} : vector<5x5xf32>, vector<5x8xf32>, vector<5x8xf32> -> vector<5x8xf32>
    %125 = vector.extract_strided_slice %21 {offsets = [24, 0], sizes = [8, 32], strides = [1, 1]} : vector<32x32xf32> to vector<8x32xf32>
    %cst_77 = arith.constant dense<0.000000e+00> : vector<5x32xf32>
    %126 = tpu.matmul %124, %125, %cst_77 {dimension_numbers = #tpu.dot_dimension_numbers<[1], [0], [0], [1], [0, 0, 1, 1], [], []>} : vector<5x8xf32>, vector<8x32xf32>, vector<5x32xf32> -> vector<5x32xf32>
    %127 = arith.addf %110, %126 : vector<5x32xf32>
    %128 = vector.broadcast %23 : vector<1x32xf32> to vector<5x32xf32>
    %129 = arith.addf %127, %128 : vector<5x32xf32>
    %130 = arith.addf %11, %129 : vector<5x32xf32>
    %cst_78 = arith.constant dense<0.000000e+00> : vector<5xf32>
    %131 = vector.multi_reduction <add>, %130, %cst_78 [1] : vector<5x32xf32> to vector<5xf32>
    %132 = vector.shape_cast %131 : vector<5xf32> to vector<5x1xf32>
    %cst_79 = arith.constant 3.200000e+01 : f32
    %133 = vector.broadcast %cst_79 : f32 to vector<5x1xf32>
    %134 = arith.divf %132, %133 : vector<5x1xf32>
    %135 = vector.broadcast %134 : vector<5x1xf32> to vector<5x32xf32>
    %136 = arith.subf %130, %135 : vector<5x32xf32>
    %137 = arith.mulf %136, %136 : vector<5x32xf32>
    %cst_80 = arith.constant dense<0.000000e+00> : vector<5xf32>
    %138 = vector.multi_reduction <add>, %137, %cst_80 [1] : vector<5x32xf32> to vector<5xf32>
    %139 = vector.shape_cast %138 : vector<5xf32> to vector<5x1xf32>
    %cst_81 = arith.constant 3.200000e+01 : f32
    %140 = vector.broadcast %cst_81 : f32 to vector<5x1xf32>
    %141 = arith.divf %139, %140 : vector<5x1xf32>
    %cst_82 = arith.constant 9.99999974E-6 : f32
    %142 = vector.broadcast %cst_82 : f32 to vector<5x1xf32>
    %143 = arith.addf %141, %142 : vector<5x1xf32>
    %144 = math.rsqrt %143 : vector<5x1xf32>
    %145 = vector.broadcast %144 : vector<5x1xf32> to vector<5x32xf32>
    %146 = arith.mulf %136, %145 : vector<5x32xf32>
    %147 = vector.broadcast %25 : vector<1x32xf32> to vector<5x32xf32>
    %148 = arith.mulf %146, %147 : vector<5x32xf32>
    %149 = vector.broadcast %27 : vector<1x32xf32> to vector<5x32xf32>
    %150 = arith.addf %148, %149 : vector<5x32xf32>
    %cst_83 = arith.constant dense<0.000000e+00> : vector<5x64xf32>
    %151 = tpu.matmul %150, %29, %cst_83 {dimension_numbers = #tpu.dot_dimension_numbers<[1], [0], [0], [1], [0, 0, 1, 1], [], []>} : vector<5x32xf32>, vector<32x64xf32>, vector<5x64xf32> -> vector<5x64xf32>
    %152 = vector.broadcast %31 : vector<1x64xf32> to vector<5x64xf32>
    %153 = arith.addf %151, %152 : vector<5x64xf32>
    %154 = arith.mulf %153, %153 : vector<5x64xf32>
    %155 = arith.mulf %153, %154 : vector<5x64xf32>
    %cst_84 = arith.constant 4.471500e-02 : f32
    %156 = vector.broadcast %cst_84 : f32 to vector<5x64xf32>
    %157 = arith.mulf %156, %155 : vector<5x64xf32>
    %158 = arith.addf %153, %157 : vector<5x64xf32>
    %cst_85 = arith.constant 0.797884583 : f32
    %159 = vector.broadcast %cst_85 : f32 to vector<5x64xf32>
    %160 = arith.mulf %159, %158 : vector<5x64xf32>
    %161 = math.tanh %160 : vector<5x64xf32>
    %cst_86 = arith.constant 1.000000e+00 : f32
    %162 = vector.broadcast %cst_86 : f32 to vector<5x64xf32>
    %163 = arith.addf %162, %161 : vector<5x64xf32>
    %cst_87 = arith.constant 5.000000e-01 : f32
    %164 = vector.broadcast %cst_87 : f32 to vector<5x64xf32>
    %165 = arith.mulf %164, %163 : vector<5x64xf32>
    %166 = arith.mulf %153, %165 : vector<5x64xf32>
    %cst_88 = arith.constant dense<0.000000e+00> : vector<5x32xf32>
    %167 = tpu.matmul %166, %33, %cst_88 {dimension_numbers = #tpu.dot_dimension_numbers<[1], [0], [0], [1], [0, 0, 1, 1], [], []>} : vector<5x64xf32>, vector<64x32xf32>, vector<5x32xf32> -> vector<5x32xf32>
    %168 = vector.broadcast %35 : vector<1x32xf32> to vector<5x32xf32>
    %169 = arith.addf %167, %168 : vector<5x32xf32>
    %170 = arith.addf %130, %169 : vector<5x32xf32>
    %cst_89 = arith.constant dense<0.000000e+00> : vector<5xf32>
    %171 = vector.multi_reduction <add>, %170, %cst_89 [1] : vector<5x32xf32> to vector<5xf32>
    %172 = vector.shape_cast %171 : vector<5xf32> to vector<5x1xf32>
    %cst_90 = arith.constant 3.200000e+01 : f32
    %173 = vector.broadcast %cst_90 : f32 to vector<5x1xf32>
    %174 = arith.divf %172, %173 : vector<5x1xf32>
    %175 = vector.broadcast %174 : vector<5x1xf32> to vector<5x32xf32>
    %176 = arith.subf %170, %175 : vector<5x32xf32>
    %177 = arith.mulf %176, %176 : vector<5x32xf32>
    %cst_91 = arith.constant dense<0.000000e+00> : vector<5xf32>
    %178 = vector.multi_reduction <add>, %177, %cst_91 [1] : vector<5x32xf32> to vector<5xf32>
    %179 = vector.shape_cast %178 : vector<5xf32> to vector<5x1xf32>
    %cst_92 = arith.constant 3.200000e+01 : f32
    %180 = vector.broadcast %cst_92 : f32 to vector<5x1xf32>
    %181 = arith.divf %179, %180 : vector<5x1xf32>
    %cst_93 = arith.constant 9.99999974E-6 : f32
    %182 = vector.broadcast %cst_93 : f32 to vector<5x1xf32>
    %183 = arith.addf %181, %182 : vector<5x1xf32>
    %184 = math.rsqrt %183 : vector<5x1xf32>
    %185 = vector.broadcast %184 : vector<5x1xf32> to vector<5x32xf32>
    %186 = arith.mulf %176, %185 : vector<5x32xf32>
    %187 = vector.broadcast %7 : vector<1x32xf32> to vector<5x32xf32>
    %188 = arith.mulf %186, %187 : vector<5x32xf32>
    %189 = vector.broadcast %9 : vector<1x32xf32> to vector<5x32xf32>
    %190 = arith.addf %188, %189 : vector<5x32xf32>
    %191 = vector.extract_strided_slice %190 {offsets = [0, 0], sizes = [1, 32], strides = [1, 1]} : vector<5x32xf32> to vector<1x32xf32>
    %c0_94 = arith.constant 0 : index
    %c0_95 = arith.constant 0 : index
    %c0_96 = arith.constant 0 : index
    %c0_97 = arith.constant 0 : index
    %192 = vector.load %arg19[%c0_94, %c0_95, %c0_96, %c0_97] : memref<1x1x1x32xf32, #tpu.memory_space<vmem>>, vector<1x1x1x32xf32>
    %193 = vector.shape_cast %192 : vector<1x1x1x32xf32> to vector<1x32xf32>
    %194 = vector.shape_cast %191 : vector<1x32xf32> to vector<1x1x1x32xf32>
    tpu.vector_store %arg19[%c0_94, %c0_95, %c0_96, %c0_97], %194 {strides = array<i32>} : memref<1x1x1x32xf32, #tpu.memory_space<vmem>>, vector<1x1x1x32xf32>,
    return
  }
  func.func @transform_0(%arg0: i32, %arg1: i32) -> (i32, i32, i32, i32) {
    %c0_i32 = arith.constant 0 : i32
    %c0_i32_0 = arith.constant 0 : i32
    %c0_i32_1 = arith.constant 0 : i32
    return %arg0, %arg1, %c0_i32, %c0_i32_0 : i32, i32, i32, i32
  }
  func.func @transform_1(%arg0: i32, %arg1: i32) -> (i32, i32, i32) {
    %c0_i32 = arith.constant 0 : i32
    %c0_i32_0 = arith.constant 0 : i32
    %c0_i32_1 = arith.constant 0 : i32
    return %arg0, %c0_i32, %c0_i32_0 : i32, i32, i32
  }
  func.func @transform_2(%arg0: i32, %arg1: i32) -> (i32, i32, i32) {
    %c0_i32 = arith.constant 0 : i32
    %c0_i32_0 = arith.constant 0 : i32
    %c0_i32_1 = arith.constant 0 : i32
    return %arg0, %c0_i32, %c0_i32_0 : i32, i32, i32
  }
  func.func @transform_3(%arg0: i32, %arg1: i32) -> (i32, i32, i32) {
    %c0_i32 = arith.constant 0 : i32
    %c0_i32_0 = arith.constant 0 : i32
    %c0_i32_1 = arith.constant 0 : i32
    return %arg0, %c0_i32, %c0_i32_0 : i32, i32, i32
  }
  func.func @transform_4(%arg0: i32, %arg1: i32) -> (i32, i32, i32) {
    %c0_i32 = arith.constant 0 : i32
    %c0_i32_0 = arith.constant 0 : i32
    %c0_i32_1 = arith.constant 0 : i32
    return %arg0, %c0_i32, %c0_i32_0 : i32, i32, i32
  }
  func.func @transform_5(%arg0: i32, %arg1: i32) -> (i32, i32, i32) {
    %c0_i32 = arith.constant 0 : i32
    %c0_i32_0 = arith.constant 0 : i32
    %c0_i32_1 = arith.constant 0 : i32
    return %arg0, %c0_i32, %c0_i32_0 : i32, i32, i32
  }
  func.func @transform_6(%arg0: i32, %arg1: i32) -> (i32, i32, i32) {
    %c0_i32 = arith.constant 0 : i32
    %c0_i32_0 = arith.constant 0 : i32
    %c0_i32_1 = arith.constant 0 : i32
    return %arg0, %c0_i32, %c0_i32_0 : i32, i32, i32
  }
  func.func @transform_7(%arg0: i32, %arg1: i32) -> (i32, i32, i32) {
    %c0_i32 = arith.constant 0 : i32
    %c0_i32_0 = arith.constant 0 : i32
    %c0_i32_1 = arith.constant 0 : i32
    return %arg0, %c0_i32, %c0_i32_0 : i32, i32, i32
  }
  func.func @transform_8(%arg0: i32, %arg1: i32) -> (i32, i32, i32) {
    %c0_i32 = arith.constant 0 : i32
    %c0_i32_0 = arith.constant 0 : i32
    %c0_i32_1 = arith.constant 0 : i32
    return %arg0, %c0_i32, %c0_i32_0 : i32, i32, i32
  }
  func.func @transform_9(%arg0: i32, %arg1: i32) -> (i32, i32, i32) {
    %c0_i32 = arith.constant 0 : i32
    %c0_i32_0 = arith.constant 0 : i32
    %c0_i32_1 = arith.constant 0 : i32
    return %arg0, %c0_i32, %c0_i32_0 : i32, i32, i32
  }
  func.func @transform_10(%arg0: i32, %arg1: i32) -> (i32, i32, i32) {
    %c0_i32 = arith.constant 0 : i32
    %c0_i32_0 = arith.constant 0 : i32
    %c0_i32_1 = arith.constant 0 : i32
    return %arg0, %c0_i32, %c0_i32_0 : i32, i32, i32
  }
  func.func @transform_11(%arg0: i32, %arg1: i32) -> (i32, i32, i32) {
    %c0_i32 = arith.constant 0 : i32
    %c0_i32_0 = arith.constant 0 : i32
    %c0_i32_1 = arith.constant 0 : i32
    return %arg0, %c0_i32, %c0_i32_0 : i32, i32, i32
  }
  func.func @transform_12(%arg0: i32, %arg1: i32) -> (i32, i32, i32) {
    %c0_i32 = arith.constant 0 : i32
    %c0_i32_0 = arith.constant 0 : i32
    %c0_i32_1 = arith.constant 0 : i32
    return %arg0, %c0_i32, %c0_i32_0 : i32, i32, i32
  }
  func.func @transform_13(%arg0: i32, %arg1: i32) -> (i32, i32, i32) {
    %c0_i32 = arith.constant 0 : i32
    %c0_i32_0 = arith.constant 0 : i32
    %c0_i32_1 = arith.constant 0 : i32
    return %arg0, %c0_i32, %c0_i32_0 : i32, i32, i32
  }
  func.func @transform_14(%arg0: i32, %arg1: i32) -> (i32, i32, i32) {
    %c0_i32 = arith.constant 0 : i32
    %c0_i32_0 = arith.constant 0 : i32
    %c0_i32_1 = arith.constant 0 : i32
    return %arg0, %c0_i32, %c0_i32_0 : i32, i32, i32
  }
  func.func @transform_15(%arg0: i32, %arg1: i32) -> (i32, i32, i32) {
    %c0_i32 = arith.constant 0 : i32
    %c0_i32_0 = arith.constant 0 : i32
    %c0_i32_1 = arith.constant 0 : i32
    return %arg0, %c0_i32, %c0_i32_0 : i32, i32, i32
  }
  func.func @transform_16(%arg0: i32, %arg1: i32) -> (i32, i32, i32) {
    %c0_i32 = arith.constant 0 : i32
    %c0_i32_0 = arith.constant 0 : i32
    %c0_i32_1 = arith.constant 0 : i32
    return %arg0, %c0_i32, %c0_i32_0 : i32, i32, i32
  }
  func.func @transform_17(%arg0: i32, %arg1: i32) -> (i32, i32, i32, i32) {
    %c0_i32 = arith.constant 0 : i32
    %c0_i32_0 = arith.constant 0 : i32
    %c0_i32_1 = arith.constant 0 : i32
    return %arg0, %arg1, %c0_i32, %c0_i32_0 : i32, i32, i32, i32
  }
}

</mosaic_0001>

<llo_original>
// kernel: tpu_custom_call.1
$region0: #{tpu_custom_call.1}
  #allocation0 [shape = 'u32[]', space=smem, size = 0x4, offset = 0x4, fixed_abs, tag = 'smem constant byte address 0x4 - core index']
  #allocation1 [shape = 'u32[144,128]{1,0:T(1,128)}', space=vmem, size = 0x12000, scoped, tag = 'internal scratch']
  %s0 = inlined_call_operand.vmem [shape: f32[3,2,5,128], index: 0, kind: input, shape index: {}]
  %s1 = inlined_call_operand.vmem [shape: f32[3,128,32], index: 1, kind: input, shape index: {}]
  %s2 = inlined_call_operand.vmem [shape: f32[3,5,32], index: 2, kind: input, shape index: {}]
  %s3 = inlined_call_operand.vmem [shape: f32[3,1,32], index: 3, kind: input, shape index: {}]
  %s4 = inlined_call_operand.vmem [shape: f32[3,1,32], index: 4, kind: input, shape index: {}]
  %s5 = inlined_call_operand.vmem [shape: f32[3,32,96], index: 5, kind: input, shape index: {}]
  %s6 = inlined_call_operand.vmem [shape: f32[3,1,96], index: 6, kind: input, shape index: {}]
  %s7 = inlined_call_operand.vmem [shape: f32[3,32,32], index: 7, kind: input, shape index: {}]
  %s8 = inlined_call_operand.vmem [shape: f32[3,1,32], index: 8, kind: input, shape index: {}]
  %s9 = inlined_call_operand.vmem [shape: f32[3,1,32], index: 9, kind: input, shape index: {}]
  %s10 = inlined_call_operand.vmem [shape: f32[3,1,32], index: 10, kind: input, shape index: {}]
  %s11 = inlined_call_operand.vmem [shape: f32[3,32,64], index: 11, kind: input, shape index: {}]
  %s12 = inlined_call_operand.vmem [shape: f32[3,1,64], index: 12, kind: input, shape index: {}]
  %s13 = inlined_call_operand.vmem [shape: f32[3,64,32], index: 13, kind: input, shape index: {}]
  %s14 = inlined_call_operand.vmem [shape: f32[3,1,32], index: 14, kind: input, shape index: {}]
  %s15 = inlined_call_operand.vmem [shape: f32[3,1,32], index: 15, kind: input, shape index: {}]
  %s16 = inlined_call_operand.vmem [shape: f32[3,1,32], index: 16, kind: input, shape index: {}]
  %s17 = inlined_call_operand.hbm [shape: f32[3,2,1,32], index: 17, kind: output, shape index: {}]
  %s18 = sld [smem:[#allocation0]]
  $region101: #{tpu_custom_call.1} parent=0
    _
  %s20 = ssub.s32 1, %s18
  %s21 = scalar_select 0, %s20, %s18
  $region1: #{tpu_custom_call.1} parent=0
    #allocation2 [shape = 'u8[1024]{0}', space=vmem, size = 0x400, scoped, tag = 'output window, operand 0']
    #allocation3 [shape = 's32[2]{0}', space=sflag, size = 0x8, scoped, tag = 'scoped memory for tpu_custom_call.1']
    %22 = vsyncpa [#allocation3], 0
    %s23 = scalar_lea.sflag [#allocation3], 1
    %24 = vsyncpa %s23, 0
    loop: start=0, step=1, limit=8
    $region2: #{tpu_custom_call.1} parent=1 // loop_pre_header
      _
    $region3: #{tpu_custom_call.1} parent=1 // loop_header
      %s26 = sphi 0, %s30
      %p27 = scmp.ge.s32.totalorder %s26, 8
      %s33 = sphi 0, %s45
      %s34 = sphi 0, %s41
      %s35 = sphi 0, %s33
      %s36 = sphi 0, %s34
      %s37 = sphi 0, %s35
      %s38 = sphi 0, %s36
      %s50 = sphi 0, %s52
      %s53 = sphi 0, %s50
      %s54 = sphi 0, %s53
      %s70 = sphi 0, %s54
      %s76 = sphi 0, %s78
      %s79 = sphi 0, %s76
      %s80 = sphi 0, %s79
      %s96 = sphi 0, %s80
      %s102 = sphi 0, %s104
      %s105 = sphi 0, %s102
      %s106 = sphi 0, %s105
      %s122 = sphi 0, %s106
      %s128 = sphi 0, %s130
      %s131 = sphi 0, %s128
      %s132 = sphi 0, %s131
      %s148 = sphi 0, %s132
      %s154 = sphi 0, %s156
      %s157 = sphi 0, %s154
      %s158 = sphi 0, %s157
      %s174 = sphi 0, %s158
      %s180 = sphi 0, %s182
      %s183 = sphi 0, %s180
      %s184 = sphi 0, %s183
      %s200 = sphi 0, %s184
      %s206 = sphi 0, %s208
      %s209 = sphi 0, %s206
      %s210 = sphi 0, %s209
      %s226 = sphi 0, %s210
      %s232 = sphi 0, %s234
      %s235 = sphi 0, %s232
      %s236 = sphi 0, %s235
      %s252 = sphi 0, %s236
      %s258 = sphi 0, %s260
      %s261 = sphi 0, %s258
      %s262 = sphi 0, %s261
      %s278 = sphi 0, %s262
      %s284 = sphi 0, %s286
      %s287 = sphi 0, %s284
      %s288 = sphi 0, %s287
      %s304 = sphi 0, %s288
      %s310 = sphi 0, %s312
      %s313 = sphi 0, %s310
      %s314 = sphi 0, %s313
      %s330 = sphi 0, %s314
      %s336 = sphi 0, %s338
      %s339 = sphi 0, %s336
      %s340 = sphi 0, %s339
      %s356 = sphi 0, %s340
      %s362 = sphi 0, %s364
      %s365 = sphi 0, %s362
      %s366 = sphi 0, %s365
      %s382 = sphi 0, %s366
      %s388 = sphi 0, %s390
      %s391 = sphi 0, %s388
      %s392 = sphi 0, %s391
      %s408 = sphi 0, %s392
      %s414 = sphi 0, %s416
      %s417 = sphi 0, %s414
      %s418 = sphi 0, %s417
      %s434 = sphi 0, %s418
      %s440 = sphi 0, %s442
      %s443 = sphi 0, %s440
      %s444 = sphi 0, %s443
      %s460 = sphi 0, %s444
      %s466 = sphi 0, %s468
      %s469 = sphi 0, %s466
      %s470 = sphi 0, %s469
      %s486 = sphi 0, %s470
      %s494 = sphi 0, %s496
      %s497 = sphi 0, %s494
      %s498 = sphi 0, %s497
      %s514 = sphi 0, %s498
    $region4: #{tpu_custom_call.1} parent=1 // loop_header_branch
      %29 = sbr.rel (%p27) target = $region8
    $region5: #{tpu_custom_call.1} parent=1 // loop_body
      %s31 = ssub.s32 %s26, 1
      %s32 = ssub.s32 %s26, 2
      %s39 = sadd.s32 1, %s34
      %p40 = scmp.ge.s32.totalorder %s39, 2
      %s41 = scalar_select %p40, 0, %s39
      %s42 = sadd.s32 1, %s33
      %s43 = scalar_select %p40, %s42, %s33
      %p44 = scmp.ge.s32.totalorder %s43, 3
      %s45 = scalar_select %p44, 0, %s43
      %s46 = ssub.s32 %s33, %s45
      %s47 = ssub.s32 %s34, %s41
      %s48 = sor.u32 %s46, %s47
      %p49 = scmp.eq.s32.totalorder %s48, 0
      %s51 = sadd.s32 %s50, 1
      %s52 = scalar_select %p49, %s50, %s51
      %p55 = pneg %p49
      %p56 = scmp.eq.s32.totalorder %s26, 5
      %p57 = por %p55, %p56
      %p58 = scmp.ne.s32.totalorder %s50, %s53
      %p59 = scmp.eq.s32.totalorder %s26, 0
      %p60 = por %p58, %p59
      %p61 = scmp.ne.s32.totalorder %s50, %s53
      %p62 = scmp.eq.s32.totalorder %s31, 5
      %p63 = por %p61, %p62
      %p64 = scmp.ne.s32.totalorder %s53, %s54
      %p65 = scmp.eq.s32.totalorder %s31, 0
      %p66 = por %p64, %p65
      %p67 = scmp.ne.s32.totalorder %s53, %s54
      %p68 = scmp.eq.s32.totalorder %s32, 5
      %p69 = por %p67, %p68
      %p71 = scmp.ne.s32.totalorder %s54, %s70
      %p72 = scmp.eq.s32.totalorder %s32, 0
      %p73 = por %p71, %p72
      %s74 = ssub.s32 %s33, %s45
      %p75 = scmp.eq.s32.totalorder %s74, 0
      %s77 = sadd.s32 %s76, 1
      %s78 = scalar_select %p75, %s76, %s77
      %p81 = pneg %p75
      %p82 = scmp.eq.s32.totalorder %s26, 5
      %p83 = por %p81, %p82
      %p84 = scmp.ne.s32.totalorder %s76, %s79
      %p85 = scmp.eq.s32.totalorder %s26, 0
      %p86 = por %p84, %p85
      %p87 = scmp.ne.s32.totalorder %s76, %s79
      %p88 = scmp.eq.s32.totalorder %s31, 5
      %p89 = por %p87, %p88
      %p90 = scmp.ne.s32.totalorder %s79, %s80
      %p91 = scmp.eq.s32.totalorder %s31, 0
      %p92 = por %p90, %p91
      %p93 = scmp.ne.s32.totalorder %s79, %s80
      %p94 = scmp.eq.s32.totalorder %s32, 5
      %p95 = por %p93, %p94
      %p97 = scmp.ne.s32.totalorder %s80, %s96
      %p98 = scmp.eq.s32.totalorder %s32, 0
      %p99 = por %p97, %p98
      %s100 = ssub.s32 %s33, %s45
      %p101 = scmp.eq.s32.totalorder %s100, 0
      %s103 = sadd.s32 %s102, 1
      %s104 = scalar_select %p101, %s102, %s103
      %p107 = pneg %p101
      %p108 = scmp.eq.s32.totalorder %s26, 5
      %p109 = por %p107, %p108
      %p110 = scmp.ne.s32.totalorder %s102, %s105
      %p111 = scmp.eq.s32.totalorder %s26, 0
      %p112 = por %p110, %p111
      %p113 = scmp.ne.s32.totalorder %s102, %s105
      %p114 = scmp.eq.s32.totalorder %s31, 5
      %p115 = por %p113, %p114
      %p116 = scmp.ne.s32.totalorder %s105, %s106
      %p117 = scmp.eq.s32.totalorder %s31, 0
      %p118 = por %p116, %p117
      %p119 = scmp.ne.s32.totalorder %s105, %s106
      %p120 = scmp.eq.s32.totalorder %s32, 5
      %p121 = por %p119, %p120
      %p123 = scmp.ne.s32.totalorder %s106, %s122
      %p124 = scmp.eq.s32.totalorder %s32, 0
      %p125 = por %p123, %p124
      %s126 = ssub.s32 %s33, %s45
      %p127 = scmp.eq.s32.totalorder %s126, 0
      %s129 = sadd.s32 %s128, 1
      %s130 = scalar_select %p127, %s128, %s129
      %p133 = pneg %p127
      %p134 = scmp.eq.s32.totalorder %s26, 5
      %p135 = por %p133, %p134
      %p136 = scmp.ne.s32.totalorder %s128, %s131
      %p137 = scmp.eq.s32.totalorder %s26, 0
      %p138 = por %p136, %p137
      %p139 = scmp.ne.s32.totalorder %s128, %s131
      %p140 = scmp.eq.s32.totalorder %s31, 5
      %p141 = por %p139, %p140
      %p142 = scmp.ne.s32.totalorder %s131, %s132
      %p143 = scmp.eq.s32.totalorder %s31, 0
      %p144 = por %p142, %p143
      %p145 = scmp.ne.s32.totalorder %s131, %s132
      %p146 = scmp.eq.s32.totalorder %s32, 5
      %p147 = por %p145, %p146
      %p149 = scmp.ne.s32.totalorder %s132, %s148
      %p150 = scmp.eq.s32.totalorder %s32, 0
      %p151 = por %p149, %p150
      %s152 = ssub.s32 %s33, %s45
      %p153 = scmp.eq.s32.totalorder %s152, 0
      %s155 = sadd.s32 %s154, 1
      %s156 = scalar_select %p153, %s154, %s155
      %p159 = pneg %p153
      %p160 = scmp.eq.s32.totalorder %s26, 5
      %p161 = por %p159, %p160
      %p162 = scmp.ne.s32.totalorder %s154, %s157
      %p163 = scmp.eq.s32.totalorder %s26, 0
      %p164 = por %p162, %p163
      %p165 = scmp.ne.s32.totalorder %s154, %s157
      %p166 = scmp.eq.s32.totalorder %s31, 5
      %p167 = por %p165, %p166
      %p168 = scmp.ne.s32.totalorder %s157, %s158
      %p169 = scmp.eq.s32.totalorder %s31, 0
      %p170 = por %p168, %p169
      %p171 = scmp.ne.s32.totalorder %s157, %s158
      %p172 = scmp.eq.s32.totalorder %s32, 5
      %p173 = por %p171, %p172
      %p175 = scmp.ne.s32.totalorder %s158, %s174
      %p176 = scmp.eq.s32.totalorder %s32, 0
      %p177 = por %p175, %p176
      %s178 = ssub.s32 %s33, %s45
      %p179 = scmp.eq.s32.totalorder %s178, 0
      %s181 = sadd.s32 %s180, 1
      %s182 = scalar_select %p179, %s180, %s181
      %p185 = pneg %p179
      %p186 = scmp.eq.s32.totalorder %s26, 5
      %p187 = por %p185, %p186
      %p188 = scmp.ne.s32.totalorder %s180, %s183
      %p189 = scmp.eq.s32.totalorder %s26, 0
      %p190 = por %p188, %p189
      %p191 = scmp.ne.s32.totalorder %s180, %s183
      %p192 = scmp.eq.s32.totalorder %s31, 5
      %p193 = por %p191, %p192
      %p194 = scmp.ne.s32.totalorder %s183, %s184
      %p195 = scmp.eq.s32.totalorder %s31, 0
      %p196 = por %p194, %p195
      %p197 = scmp.ne.s32.totalorder %s183, %s184
      %p198 = scmp.eq.s32.totalorder %s32, 5
      %p199 = por %p197, %p198
      %p201 = scmp.ne.s32.totalorder %s184, %s200
      %p202 = scmp.eq.s32.totalorder %s32, 0
      %p203 = por %p201, %p202
      %s204 = ssub.s32 %s33, %s45
      %p205 = scmp.eq.s32.totalorder %s204, 0
      %s207 = sadd.s32 %s206, 1
      %s208 = scalar_select %p205, %s206, %s207
      %p211 = pneg %p205
      %p212 = scmp.eq.s32.totalorder %s26, 5
      %p213 = por %p211, %p212
      %p214 = scmp.ne.s32.totalorder %s206, %s209
      %p215 = scmp.eq.s32.totalorder %s26, 0
      %p216 = por %p214, %p215
      %p217 = scmp.ne.s32.totalorder %s206, %s209
      %p218 = scmp.eq.s32.totalorder %s31, 5
      %p219 = por %p217, %p218
      %p220 = scmp.ne.s32.totalorder %s209, %s210
      %p221 = scmp.eq.s32.totalorder %s31, 0
      %p222 = por %p220, %p221
      %p223 = scmp.ne.s32.totalorder %s209, %s210
      %p224 = scmp.eq.s32.totalorder %s32, 5
      %p225 = por %p223, %p224
      %p227 = scmp.ne.s32.totalorder %s210, %s226
      %p228 = scmp.eq.s32.totalorder %s32, 0
      %p229 = por %p227, %p228
      %s230 = ssub.s32 %s33, %s45
      %p231 = scmp.eq.s32.totalorder %s230, 0
      %s233 = sadd.s32 %s232, 1
      %s234 = scalar_select %p231, %s232, %s233
      %p237 = pneg %p231
      %p238 = scmp.eq.s32.totalorder %s26, 5
      %p239 = por %p237, %p238
      %p240 = scmp.ne.s32.totalorder %s232, %s235
      %p241 = scmp.eq.s32.totalorder %s26, 0
      %p242 = por %p240, %p241
      %p243 = scmp.ne.s32.totalorder %s232, %s235
      %p244 = scmp.eq.s32.totalorder %s31, 5
      %p245 = por %p243, %p244
      %p246 = scmp.ne.s32.totalorder %s235, %s236
      %p247 = scmp.eq.s32.totalorder %s31, 0
      %p248 = por %p246, %p247
      %p249 = scmp.ne.s32.totalorder %s235, %s236
      %p250 = scmp.eq.s32.totalorder %s32, 5
      %p251 = por %p249, %p250
      %p253 = scmp.ne.s32.totalorder %s236, %s252
      %p254 = scmp.eq.s32.totalorder %s32, 0
      %p255 = por %p253, %p254
      %s256 = ssub.s32 %s33, %s45
      %p257 = scmp.eq.s32.totalorder %s256, 0
      %s259 = sadd.s32 %s258, 1
      %s260 = scalar_select %p257, %s258, %s259
      %p263 = pneg %p257
      %p264 = scmp.eq.s32.totalorder %s26, 5
      %p265 = por %p263, %p264
      %p266 = scmp.ne.s32.totalorder %s258, %s261
      %p267 = scmp.eq.s32.totalorder %s26, 0
      %p268 = por %p266, %p267
      %p269 = scmp.ne.s32.totalorder %s258, %s261
      %p270 = scmp.eq.s32.totalorder %s31, 5
      %p271 = por %p269, %p270
      %p272 = scmp.ne.s32.totalorder %s261, %s262
      %p273 = scmp.eq.s32.totalorder %s31, 0
      %p274 = por %p272, %p273
      %p275 = scmp.ne.s32.totalorder %s261, %s262
      %p276 = scmp.eq.s32.totalorder %s32, 5
      %p277 = por %p275, %p276
      %p279 = scmp.ne.s32.totalorder %s262, %s278
      %p280 = scmp.eq.s32.totalorder %s32, 0
      %p281 = por %p279, %p280
      %s282 = ssub.s32 %s33, %s45
      %p283 = scmp.eq.s32.totalorder %s282, 0
      %s285 = sadd.s32 %s284, 1
      %s286 = scalar_select %p283, %s284, %s285
      %p289 = pneg %p283
      %p290 = scmp.eq.s32.totalorder %s26, 5
      %p291 = por %p289, %p290
      %p292 = scmp.ne.s32.totalorder %s284, %s287
      %p293 = scmp.eq.s32.totalorder %s26, 0
      %p294 = por %p292, %p293
      %p295 = scmp.ne.s32.totalorder %s284, %s287
      %p296 = scmp.eq.s32.totalorder %s31, 5
      %p297 = por %p295, %p296
      %p298 = scmp.ne.s32.totalorder %s287, %s288
      %p299 = scmp.eq.s32.totalorder %s31, 0
      %p300 = por %p298, %p299
      %p301 = scmp.ne.s32.totalorder %s287, %s288
      %p302 = scmp.eq.s32.totalorder %s32, 5
      %p303 = por %p301, %p302
      %p305 = scmp.ne.s32.totalorder %s288, %s304
      %p306 = scmp.eq.s32.totalorder %s32, 0
      %p307 = por %p305, %p306
      %s308 = ssub.s32 %s33, %s45
      %p309 = scmp.eq.s32.totalorder %s308, 0
      %s311 = sadd.s32 %s310, 1
      %s312 = scalar_select %p309, %s310, %s311
      %p315 = pneg %p309
      %p316 = scmp.eq.s32.totalorder %s26, 5
      %p317 = por %p315, %p316
      %p318 = scmp.ne.s32.totalorder %s310, %s313
      %p319 = scmp.eq.s32.totalorder %s26, 0
      %p320 = por %p318, %p319
      %p321 = scmp.ne.s32.totalorder %s310, %s313
      %p322 = scmp.eq.s32.totalorder %s31, 5
      %p323 = por %p321, %p322
      %p324 = scmp.ne.s32.totalorder %s313, %s314
      %p325 = scmp.eq.s32.totalorder %s31, 0
      %p326 = por %p324, %p325
      %p327 = scmp.ne.s32.totalorder %s313, %s314
      %p328 = scmp.eq.s32.totalorder %s32, 5
      %p329 = por %p327, %p328
      %p331 = scmp.ne.s32.totalorder %s314, %s330
      %p332 = scmp.eq.s32.totalorder %s32, 0
      %p333 = por %p331, %p332
      %s334 = ssub.s32 %s33, %s45
      %p335 = scmp.eq.s32.totalorder %s334, 0
      %s337 = sadd.s32 %s336, 1
      %s338 = scalar_select %p335, %s336, %s337
      %p341 = pneg %p335
      %p342 = scmp.eq.s32.totalorder %s26, 5
      %p343 = por %p341, %p342
      %p344 = scmp.ne.s32.totalorder %s336, %s339
      %p345 = scmp.eq.s32.totalorder %s26, 0
      %p346 = por %p344, %p345
      %p347 = scmp.ne.s32.totalorder %s336, %s339
      %p348 = scmp.eq.s32.totalorder %s31, 5
      %p349 = por %p347, %p348
      %p350 = scmp.ne.s32.totalorder %s339, %s340
      %p351 = scmp.eq.s32.totalorder %s31, 0
      %p352 = por %p350, %p351
      %p353 = scmp.ne.s32.totalorder %s339, %s340
      %p354 = scmp.eq.s32.totalorder %s32, 5
      %p355 = por %p353, %p354
      %p357 = scmp.ne.s32.totalorder %s340, %s356
      %p358 = scmp.eq.s32.totalorder %s32, 0
      %p359 = por %p357, %p358
      %s360 = ssub.s32 %s33, %s45
      %p361 = scmp.eq.s32.totalorder %s360, 0
      %s363 = sadd.s32 %s362, 1
      %s364 = scalar_select %p361, %s362, %s363
      %p367 = pneg %p361
      %p368 = scmp.eq.s32.totalorder %s26, 5
      %p369 = por %p367, %p368
      %p370 = scmp.ne.s32.totalorder %s362, %s365
      %p371 = scmp.eq.s32.totalorder %s26, 0
      %p372 = por %p370, %p371
      %p373 = scmp.ne.s32.totalorder %s362, %s365
      %p374 = scmp.eq.s32.totalorder %s31, 5
      %p375 = por %p373, %p374
      %p376 = scmp.ne.s32.totalorder %s365, %s366
      %p377 = scmp.eq.s32.totalorder %s31, 0
      %p378 = por %p376, %p377
      %p379 = scmp.ne.s32.totalorder %s365, %s366
      %p380 = scmp.eq.s32.totalorder %s32, 5
      %p381 = por %p379, %p380
      %p383 = scmp.ne.s32.totalorder %s366, %s382
      %p384 = scmp.eq.s32.totalorder %s32, 0
      %p385 = por %p383, %p384
      %s386 = ssub.s32 %s33, %s45
      %p387 = scmp.eq.s32.totalorder %s386, 0
      %s389 = sadd.s32 %s388, 1
      %s390 = scalar_select %p387, %s388, %s389
      %p393 = pneg %p387
      %p394 = scmp.eq.s32.totalorder %s26, 5
      %p395 = por %p393, %p394
      %p396 = scmp.ne.s32.totalorder %s388, %s391
      %p397 = scmp.eq.s32.totalorder %s26, 0
      %p398 = por %p396, %p397
      %p399 = scmp.ne.s32.totalorder %s388, %s391
      %p400 = scmp.eq.s32.totalorder %s31, 5
      %p401 = por %p399, %p400
      %p402 = scmp.ne.s32.totalorder %s391, %s392
      %p403 = scmp.eq.s32.totalorder %s31, 0
      %p404 = por %p402, %p403
      %p405 = scmp.ne.s32.totalorder %s391, %s392
      %p406 = scmp.eq.s32.totalorder %s32, 5
      %p407 = por %p405, %p406
      %p409 = scmp.ne.s32.totalorder %s392, %s408
      %p410 = scmp.eq.s32.totalorder %s32, 0
      %p411 = por %p409, %p410
      %s412 = ssub.s32 %s33, %s45
      %p413 = scmp.eq.s32.totalorder %s412, 0
      %s415 = sadd.s32 %s414, 1
      %s416 = scalar_select %p413, %s414, %s415
      %p419 = pneg %p413
      %p420 = scmp.eq.s32.totalorder %s26, 5
      %p421 = por %p419, %p420
      %p422 = scmp.ne.s32.totalorder %s414, %s417
      %p423 = scmp.eq.s32.totalorder %s26, 0
      %p424 = por %p422, %p423
      %p425 = scmp.ne.s32.totalorder %s414, %s417
      %p426 = scmp.eq.s32.totalorder %s31, 5
      %p427 = por %p425, %p426
      %p428 = scmp.ne.s32.totalorder %s417, %s418
      %p429 = scmp.eq.s32.totalorder %s31, 0
      %p430 = por %p428, %p429
      %p431 = scmp.ne.s32.totalorder %s417, %s418
      %p432 = scmp.eq.s32.totalorder %s32, 5
      %p433 = por %p431, %p432
      %p435 = scmp.ne.s32.totalorder %s418, %s434
      %p436 = scmp.eq.s32.totalorder %s32, 0
      %p437 = por %p435, %p436
      %s438 = ssub.s32 %s33, %s45
      %p439 = scmp.eq.s32.totalorder %s438, 0
      %s441 = sadd.s32 %s440, 1
      %s442 = scalar_select %p439, %s440, %s441
      %p445 = pneg %p439
      %p446 = scmp.eq.s32.totalorder %s26, 5
      %p447 = por %p445, %p446
      %p448 = scmp.ne.s32.totalorder %s440, %s443
      %p449 = scmp.eq.s32.totalorder %s26, 0
      %p450 = por %p448, %p449
      %p451 = scmp.ne.s32.totalorder %s440, %s443
      %p452 = scmp.eq.s32.totalorder %s31, 5
      %p453 = por %p451, %p452
      %p454 = scmp.ne.s32.totalorder %s443, %s444
      %p455 = scmp.eq.s32.totalorder %s31, 0
      %p456 = por %p454, %p455
      %p457 = scmp.ne.s32.totalorder %s443, %s444
      %p458 = scmp.eq.s32.totalorder %s32, 5
      %p459 = por %p457, %p458
      %p461 = scmp.ne.s32.totalorder %s444, %s460
      %p462 = scmp.eq.s32.totalorder %s32, 0
      %p463 = por %p461, %p462
      %s464 = ssub.s32 %s33, %s45
      %p465 = scmp.eq.s32.totalorder %s464, 0
      %s467 = sadd.s32 %s466, 1
      %s468 = scalar_select %p465, %s466, %s467
      %p471 = pneg %p465
      %p472 = scmp.eq.s32.totalorder %s26, 5
      %p473 = por %p471, %p472
      %p474 = scmp.ne.s32.totalorder %s466, %s469
      %p475 = scmp.eq.s32.totalorder %s26, 0
      %p476 = por %p474, %p475
      %p477 = scmp.ne.s32.totalorder %s466, %s469
      %p478 = scmp.eq.s32.totalorder %s31, 5
      %p479 = por %p477, %p478
      %p480 = scmp.ne.s32.totalorder %s469, %s470
      %p481 = scmp.eq.s32.totalorder %s31, 0
      %p482 = por %p480, %p481
      %p483 = scmp.ne.s32.totalorder %s469, %s470
      %p484 = scmp.eq.s32.totalorder %s32, 5
      %p485 = por %p483, %p484
      %p487 = scmp.ne.s32.totalorder %s470, %s486
      %p488 = scmp.eq.s32.totalorder %s32, 0
      %p489 = por %p487, %p488
      %s490 = ssub.s32 %s33, %s45
      %s491 = ssub.s32 %s34, %s41
      %s492 = sor.u32 %s490, %s491
      %p493 = scmp.eq.s32.totalorder %s492, 0
      %s495 = sadd.s32 %s494, 1
      %s496 = scalar_select %p493, %s494, %s495
      %p499 = pneg %p493
      %p500 = scmp.eq.s32.totalorder %s26, 5
      %p501 = por %p499, %p500
      %p502 = scmp.ne.s32.totalorder %s494, %s497
      %p503 = scmp.eq.s32.totalorder %s26, 0
      %p504 = por %p502, %p503
      %p505 = scmp.ne.s32.totalorder %s494, %s497
      %p506 = scmp.eq.s32.totalorder %s31, 5
      %p507 = por %p505, %p506
      %p508 = scmp.ne.s32.totalorder %s497, %s498
      %p509 = scmp.eq.s32.totalorder %s31, 0
      %p510 = por %p508, %p509
      %p511 = scmp.ne.s32.totalorder %s497, %s498
      %p512 = scmp.eq.s32.totalorder %s32, 5
      %p513 = por %p511, %p512
      %p515 = scmp.ne.s32.totalorder %s498, %s514
      %p516 = scmp.eq.s32.totalorder %s32, 0
      %p517 = por %p515, %p516
      %p518 = scmp.le.s32.totalorder 1, %s26
      %p519 = scmp.lt.s32.totalorder %s26, 7
      %p520 = pnand %p518, %p519
      %p521 = pneg %p520
      // Predicated region
      $region9: #{tpu_custom_call.1} parent=5 // pred_check
        _
      $region10: #{tpu_custom_call.1} parent=5 // pred_check_branch
        %523 = sbr.rel (%p520) target = $region12
      $region11: #{tpu_custom_call.1} parent=5 // pred_region
        %s524 = ssub.s32 %s26, 1
      $region12: #{tpu_custom_call.1} parent=5 // pred_fallthru
        _
      %p525 = scmp.lt.s32.totalorder %s26, 6
      // Predicated region
      $region13: #{tpu_custom_call.1} parent=5 // pred_check
        %p526 = pneg %p525
      $region14: #{tpu_custom_call.1} parent=5 // pred_check_branch
        %528 = sbr.rel (%p526) target = $region16
      $region15: #{tpu_custom_call.1} parent=5 // pred_region
        // Predicated region
        $region17: #{tpu_custom_call.1} parent=15 // pred_check
          %p529 = pneg %p60
        $region18: #{tpu_custom_call.1} parent=15 // pred_check_branch
          %531 = sbr.rel (%p529) target = $region20
        $region19: #{tpu_custom_call.1} parent=15 // pred_region
          %p532 = scmp.lt.s32.totalorder %s33, 2
          %s533 = scalar_select %p532, %s33, 2
          %p534 = scmp.lt.s32.totalorder %s34, 1
          %s535 = scalar_select %p534, %s34, 1
          %s536 = smul.addr %s533, 2
          %s537 = sadd.s32 %s535, %s536
          %s538 = smul.addr %s537, 8
          %s539 = scalar_lea.vmem %s0, %s538
        $region20: #{tpu_custom_call.1} parent=15 // pred_fallthru
          _
        // Predicated region
        $region21: #{tpu_custom_call.1} parent=15 // pred_check
          %p540 = pneg %p86
        $region22: #{tpu_custom_call.1} parent=15 // pred_check_branch
          %542 = sbr.rel (%p540) target = $region24
        $region23: #{tpu_custom_call.1} parent=15 // pred_region
          %p543 = scmp.lt.s32.totalorder %s33, 2
          %s544 = scalar_select %p543, %s33, 2
          %s545 = smul.addr %s544, 16
          %s546 = smul.addr %s545, 8
          %s547 = scalar_lea.vmem %s1, %s546
        $region24: #{tpu_custom_call.1} parent=15 // pred_fallthru
          _
        // Predicated region
        $region25: #{tpu_custom_call.1} parent=15 // pred_check
          %p548 = pneg %p112
        $region26: #{tpu_custom_call.1} parent=15 // pred_check_branch
          %550 = sbr.rel (%p548) target = $region28
        $region27: #{tpu_custom_call.1} parent=15 // pred_region
          %p551 = scmp.lt.s32.totalorder %s33, 2
          %s552 = scalar_select %p551, %s33, 2
          %s553 = smul.addr %s552, 8
          %s554 = scalar_lea.vmem %s2, %s553
        $region28: #{tpu_custom_call.1} parent=15 // pred_fallthru
          _
        // Predicated region
        $region29: #{tpu_custom_call.1} parent=15 // pred_check
          %p555 = pneg %p138
        $region30: #{tpu_custom_call.1} parent=15 // pred_check_branch
          %557 = sbr.rel (%p555) target = $region32
        $region31: #{tpu_custom_call.1} parent=15 // pred_region
          %p558 = scmp.lt.s32.totalorder %s33, 2
          %s559 = scalar_select %p558, %s33, 2
          %s560 = scalar_lea.vmem %s3, %s559
        $region32: #{tpu_custom_call.1} parent=15 // pred_fallthru
          _
        // Predicated region
        $region33: #{tpu_custom_call.1} parent=15 // pred_check
          %p561 = pneg %p164
        $region34: #{tpu_custom_call.1} parent=15 // pred_check_branch
          %563 = sbr.rel (%p561) target = $region36
        $region35: #{tpu_custom_call.1} parent=15 // pred_region
          %p564 = scmp.lt.s32.totalorder %s33, 2
          %s565 = scalar_select %p564, %s33, 2
          %s566 = scalar_lea.vmem %s4, %s565
        $region36: #{tpu_custom_call.1} parent=15 // pred_fallthru
          _
        // Predicated region
        $region37: #{tpu_custom_call.1} parent=15 // pred_check
          %p567 = pneg %p190
        $region38: #{tpu_custom_call.1} parent=15 // pred_check_branch
          %569 = sbr.rel (%p567) target = $region40
        $region39: #{tpu_custom_call.1} parent=15 // pred_region
          %p570 = scmp.lt.s32.totalorder %s33, 2
          %s571 = scalar_select %p570, %s33, 2
          %s572 = smul.addr %s571, 4
          %s573 = smul.addr %s572, 8
          %s574 = scalar_lea.vmem %s5, %s573
        $region40: #{tpu_custom_call.1} parent=15 // pred_fallthru
          _
        // Predicated region
        $region41: #{tpu_custom_call.1} parent=15 // pred_check
          %p575 = pneg %p216
        $region42: #{tpu_custom_call.1} parent=15 // pred_check_branch
          %577 = sbr.rel (%p575) target = $region44
        $region43: #{tpu_custom_call.1} parent=15 // pred_region
          %p578 = scmp.lt.s32.totalorder %s33, 2
          %s579 = scalar_select %p578, %s33, 2
          %s580 = scalar_lea.vmem %s6, %s579
        $region44: #{tpu_custom_call.1} parent=15 // pred_fallthru
          _
        // Predicated region
        $region45: #{tpu_custom_call.1} parent=15 // pred_check
          %p581 = pneg %p242
        $region46: #{tpu_custom_call.1} parent=15 // pred_check_branch
          %583 = sbr.rel (%p581) target = $region48
        $region47: #{tpu_custom_call.1} parent=15 // pred_region
          %p584 = scmp.lt.s32.totalorder %s33, 2
          %s585 = scalar_select %p584, %s33, 2
          %s586 = smul.addr %s585, 4
          %s587 = smul.addr %s586, 8
          %s588 = scalar_lea.vmem %s7, %s587
        $region48: #{tpu_custom_call.1} parent=15 // pred_fallthru
          _
        // Predicated region
        $region49: #{tpu_custom_call.1} parent=15 // pred_check
          %p589 = pneg %p268
        $region50: #{tpu_custom_call.1} parent=15 // pred_check_branch
          %591 = sbr.rel (%p589) target = $region52
        $region51: #{tpu_custom_call.1} parent=15 // pred_region
          %p592 = scmp.lt.s32.totalorder %s33, 2
          %s593 = scalar_select %p592, %s33, 2
          %s594 = scalar_lea.vmem %s8, %s593
        $region52: #{tpu_custom_call.1} parent=15 // pred_fallthru
          _
        // Predicated region
        $region53: #{tpu_custom_call.1} parent=15 // pred_check
          %p595 = pneg %p294
        $region54: #{tpu_custom_call.1} parent=15 // pred_check_branch
          %597 = sbr.rel (%p595) target = $region56
        $region55: #{tpu_custom_call.1} parent=15 // pred_region
          %p598 = scmp.lt.s32.totalorder %s33, 2
          %s599 = scalar_select %p598, %s33, 2
          %s600 = scalar_lea.vmem %s9, %s599
        $region56: #{tpu_custom_call.1} parent=15 // pred_fallthru
          _
        // Predicated region
        $region57: #{tpu_custom_call.1} parent=15 // pred_check
          %p601 = pneg %p320
        $region58: #{tpu_custom_call.1} parent=15 // pred_check_branch
          %603 = sbr.rel (%p601) target = $region60
        $region59: #{tpu_custom_call.1} parent=15 // pred_region
          %p604 = scmp.lt.s32.totalorder %s33, 2
          %s605 = scalar_select %p604, %s33, 2
          %s606 = scalar_lea.vmem %s10, %s605
        $region60: #{tpu_custom_call.1} parent=15 // pred_fallthru
          _
        // Predicated region
        $region61: #{tpu_custom_call.1} parent=15 // pred_check
          %p607 = pneg %p346
        $region62: #{tpu_custom_call.1} parent=15 // pred_check_branch
          %609 = sbr.rel (%p607) target = $region64
        $region63: #{tpu_custom_call.1} parent=15 // pred_region
          %p610 = scmp.lt.s32.totalorder %s33, 2
          %s611 = scalar_select %p610, %s33, 2
          %s612 = smul.addr %s611, 4
          %s613 = smul.addr %s612, 8
          %s614 = scalar_lea.vmem %s11, %s613
        $region64: #{tpu_custom_call.1} parent=15 // pred_fallthru
          _
        // Predicated region
        $region65: #{tpu_custom_call.1} parent=15 // pred_check
          %p615 = pneg %p372
        $region66: #{tpu_custom_call.1} parent=15 // pred_check_branch
          %617 = sbr.rel (%p615) target = $region68
        $region67: #{tpu_custom_call.1} parent=15 // pred_region
          %p618 = scmp.lt.s32.totalorder %s33, 2
          %s619 = scalar_select %p618, %s33, 2
          %s620 = scalar_lea.vmem %s12, %s619
        $region68: #{tpu_custom_call.1} parent=15 // pred_fallthru
          _
        // Predicated region
        $region69: #{tpu_custom_call.1} parent=15 // pred_check
          %p621 = pneg %p398
        $region70: #{tpu_custom_call.1} parent=15 // pred_check_branch
          %623 = sbr.rel (%p621) target = $region72
        $region71: #{tpu_custom_call.1} parent=15 // pred_region
          %p624 = scmp.lt.s32.totalorder %s33, 2
          %s625 = scalar_select %p624, %s33, 2
          %s626 = smul.addr %s625, 8
          %s627 = smul.addr %s626, 8
          %s628 = scalar_lea.vmem %s13, %s627
        $region72: #{tpu_custom_call.1} parent=15 // pred_fallthru
          _
        // Predicated region
        $region73: #{tpu_custom_call.1} parent=15 // pred_check
          %p629 = pneg %p424
        $region74: #{tpu_custom_call.1} parent=15 // pred_check_branch
          %631 = sbr.rel (%p629) target = $region76
        $region75: #{tpu_custom_call.1} parent=15 // pred_region
          %p632 = scmp.lt.s32.totalorder %s33, 2
          %s633 = scalar_select %p632, %s33, 2
          %s634 = scalar_lea.vmem %s14, %s633
        $region76: #{tpu_custom_call.1} parent=15 // pred_fallthru
          _
        // Predicated region
        $region77: #{tpu_custom_call.1} parent=15 // pred_check
          %p635 = pneg %p450
        $region78: #{tpu_custom_call.1} parent=15 // pred_check_branch
          %637 = sbr.rel (%p635) target = $region80
        $region79: #{tpu_custom_call.1} parent=15 // pred_region
          %p638 = scmp.lt.s32.totalorder %s33, 2
          %s639 = scalar_select %p638, %s33, 2
          %s640 = scalar_lea.vmem %s15, %s639
        $region80: #{tpu_custom_call.1} parent=15 // pred_fallthru
          _
        // Predicated region
        $region81: #{tpu_custom_call.1} parent=15 // pred_check
          %p641 = pneg %p476
        $region82: #{tpu_custom_call.1} parent=15 // pred_check_branch
          %643 = sbr.rel (%p641) target = $region84
        $region83: #{tpu_custom_call.1} parent=15 // pred_region
          %p644 = scmp.lt.s32.totalorder %s33, 2
          %s645 = scalar_select %p644, %s33, 2
          %s646 = scalar_lea.vmem %s16, %s645
        $region84: #{tpu_custom_call.1} parent=15 // pred_fallthru
          _
      $region16: #{tpu_custom_call.1} parent=5 // pred_fallthru
        _
      %p647 = scmp.le.s32.totalorder 1, %s26
      %p648 = scmp.lt.s32.totalorder %s26, 7
      %p649 = pnand %p647, %p648
      %p650 = pneg %p649
      // Predicated region
      $region85: #{tpu_custom_call.1} parent=5 // pred_check
        _
      $region86: #{tpu_custom_call.1} parent=5 // pred_check_branch
        %652 = sbr.rel (%p649) target = $region88
      $region87: #{tpu_custom_call.1} parent=5 // pred_region
        %s653 = ssub.s32 %s26, 1
        %p654 = scmp.lt.s32.totalorder %s35, 2
        %s655 = scalar_select %p654, %s35, 2
        %p656 = scmp.lt.s32.totalorder %s36, 1
        %s657 = scalar_select %p656, %s36, 1
        %s658 = smul.addr %s655, 2
        %s659 = sadd.s32 %s657, %s658
        %s660 = smul.addr %s659, 8
        %s661 = scalar_lea.vmem %s0, %s660
        %p662 = pneg %p66
        %p663 = pneg %p63
        %p664 = scmp.lt.s32.totalorder %s35, 2
        %s665 = scalar_select %p664, %s35, 2
        %s666 = smul.addr %s665, 16
        %s667 = smul.addr %s666, 8
        %s668 = scalar_lea.vmem %s1, %s667
        %p669 = pneg %p92
        %p670 = pneg %p89
        %p671 = scmp.lt.s32.totalorder %s35, 2
        %s672 = scalar_select %p671, %s35, 2
        %s673 = smul.addr %s672, 8
        %s674 = scalar_lea.vmem %s2, %s673
        %p675 = pneg %p118
        %p676 = pneg %p115
        %p677 = scmp.lt.s32.totalorder %s35, 2
        %s678 = scalar_select %p677, %s35, 2
        %s679 = scalar_lea.vmem %s3, %s678
        %p680 = pneg %p144
        %p681 = pneg %p141
        %p682 = scmp.lt.s32.totalorder %s35, 2
        %s683 = scalar_select %p682, %s35, 2
        %s684 = scalar_lea.vmem %s4, %s683
        %p685 = pneg %p170
        %p686 = pneg %p167
        %p687 = scmp.lt.s32.totalorder %s35, 2
        %s688 = scalar_select %p687, %s35, 2
        %s689 = smul.addr %s688, 4
        %s690 = smul.addr %s689, 8
        %s691 = scalar_lea.vmem %s5, %s690
        %p692 = pneg %p196
        %p693 = pneg %p193
        %p694 = scmp.lt.s32.totalorder %s35, 2
        %s695 = scalar_select %p694, %s35, 2
        %s696 = scalar_lea.vmem %s6, %s695
        %p697 = pneg %p222
        %p698 = pneg %p219
        %p699 = scmp.lt.s32.totalorder %s35, 2
        %s700 = scalar_select %p699, %s35, 2
        %s701 = smul.addr %s700, 4
        %s702 = smul.addr %s701, 8
        %s703 = scalar_lea.vmem %s7, %s702
        %p704 = pneg %p248
        %p705 = pneg %p245
        %p706 = scmp.lt.s32.totalorder %s35, 2
        %s707 = scalar_select %p706, %s35, 2
        %s708 = scalar_lea.vmem %s8, %s707
        %p709 = pneg %p274
        %p710 = pneg %p271
        %p711 = scmp.lt.s32.totalorder %s35, 2
        %s712 = scalar_select %p711, %s35, 2
        %s713 = scalar_lea.vmem %s9, %s712
        %p714 = pneg %p300
        %p715 = pneg %p297
        %p716 = scmp.lt.s32.totalorder %s35, 2
        %s717 = scalar_select %p716, %s35, 2
        %s718 = scalar_lea.vmem %s10, %s717
        %p719 = pneg %p326
        %p720 = pneg %p323
        %p721 = scmp.lt.s32.totalorder %s35, 2
        %s722 = scalar_select %p721, %s35, 2
        %s723 = smul.addr %s722, 4
        %s724 = smul.addr %s723, 8
        %s725 = scalar_lea.vmem %s11, %s724
        %p726 = pneg %p352
        %p727 = pneg %p349
        %p728 = scmp.lt.s32.totalorder %s35, 2
        %s729 = scalar_select %p728, %s35, 2
        %s730 = scalar_lea.vmem %s12, %s729
        %p731 = pneg %p378
        %p732 = pneg %p375
        %p733 = scmp.lt.s32.totalorder %s35, 2
        %s734 = scalar_select %p733, %s35, 2
        %s735 = smul.addr %s734, 8
        %s736 = smul.addr %s735, 8
        %s737 = scalar_lea.vmem %s13, %s736
        %p738 = pneg %p404
        %p739 = pneg %p401
        %p740 = scmp.lt.s32.totalorder %s35, 2
        %s741 = scalar_select %p740, %s35, 2
        %s742 = scalar_lea.vmem %s14, %s741
        %p743 = pneg %p430
        %p744 = pneg %p427
        %p745 = scmp.lt.s32.totalorder %s35, 2
        %s746 = scalar_select %p745, %s35, 2
        %s747 = scalar_lea.vmem %s15, %s746
        %p748 = pneg %p456
        %p749 = pneg %p453
        %p750 = scmp.lt.s32.totalorder %s35, 2
        %s751 = scalar_select %p750, %s35, 2
        %s752 = scalar_lea.vmem %s16, %s751
        %p753 = pneg %p482
        %p754 = pneg %p479
        %p755 = pneg %p510
        %p756 = pneg %p507
        %s757 = sand.u32 %s497, 1
        %s758 = scalar_lea.sflag [#allocation3], %s757
        %s759 = sand.u32 %s497, 1
        %s760 = scalar_lea.vmem [#allocation2], %s759
        %p761 = scmp.lt.s32.totalorder %s35, 2
        %s762 = scalar_select %p761, %s35, 2
        %p763 = scmp.lt.s32.totalorder %s36, 1
        %s764 = scalar_select %p763, %s36, 1
        %s765 = smul.addr %s762, 2
        %s766 = sadd.s32 %s764, %s765
        %s767 = smul.addr %s766, 8
        %s768 = scalar_lea.vmem %s0, %s767
        %p769 = scmp.lt.s32.totalorder %s35, 2
        %s770 = scalar_select %p769, %s35, 2
        %s771 = smul.addr %s770, 16
        %s772 = smul.addr %s771, 8
        %s773 = scalar_lea.vmem %s1, %s772
        %p774 = scmp.lt.s32.totalorder %s35, 2
        %s775 = scalar_select %p774, %s35, 2
        %s776 = smul.addr %s775, 8
        %s777 = scalar_lea.vmem %s2, %s776
        %p778 = scmp.lt.s32.totalorder %s35, 2
        %s779 = scalar_select %p778, %s35, 2
        %s780 = scalar_lea.vmem %s3, %s779
        %p781 = scmp.lt.s32.totalorder %s35, 2
        %s782 = scalar_select %p781, %s35, 2
        %s783 = scalar_lea.vmem %s4, %s782
        %p784 = scmp.lt.s32.totalorder %s35, 2
        %s785 = scalar_select %p784, %s35, 2
        %s786 = smul.addr %s785, 4
        %s787 = smul.addr %s786, 8
        %s788 = scalar_lea.vmem %s5, %s787
        %p789 = scmp.lt.s32.totalorder %s35, 2
        %s790 = scalar_select %p789, %s35, 2
        %s791 = scalar_lea.vmem %s6, %s790
        %p792 = scmp.lt.s32.totalorder %s35, 2
        %s793 = scalar_select %p792, %s35, 2
        %s794 = smul.addr %s793, 4
        %s795 = smul.addr %s794, 8
        %s796 = scalar_lea.vmem %s7, %s795
        %p797 = scmp.lt.s32.totalorder %s35, 2
        %s798 = scalar_select %p797, %s35, 2
        %s799 = scalar_lea.vmem %s8, %s798
        %p800 = scmp.lt.s32.totalorder %s35, 2
        %s801 = scalar_select %p800, %s35, 2
        %s802 = scalar_lea.vmem %s9, %s801
        %p803 = scmp.lt.s32.totalorder %s35, 2
        %s804 = scalar_select %p803, %s35, 2
        %s805 = scalar_lea.vmem %s10, %s804
        %p806 = scmp.lt.s32.totalorder %s35, 2
        %s807 = scalar_select %p806, %s35, 2
        %s808 = smul.addr %s807, 4
        %s809 = smul.addr %s808, 8
        %s810 = scalar_lea.vmem %s11, %s809
        %p811 = scmp.lt.s32.totalorder %s35, 2
        %s812 = scalar_select %p811, %s35, 2
        %s813 = scalar_lea.vmem %s12, %s812
        %p814 = scmp.lt.s32.totalorder %s35, 2
        %s815 = scalar_select %p814, %s35, 2
        %s816 = smul.addr %s815, 8
        %s817 = smul.addr %s816, 8
        %s818 = scalar_lea.vmem %s13, %s817
        %p819 = scmp.lt.s32.totalorder %s35, 2
        %s820 = scalar_select %p819, %s35, 2
        %s821 = scalar_lea.vmem %s14, %s820
        %p822 = scmp.lt.s32.totalorder %s35, 2
        %s823 = scalar_select %p822, %s35, 2
        %s824 = scalar_lea.vmem %s15, %s823
        %p825 = scmp.lt.s32.totalorder %s35, 2
        %s826 = scalar_select %p825, %s35, 2
        %s827 = scalar_lea.vmem %s16, %s826
        %v828 = vld [vmem:[%s768] sm:$0x1f]
        %v829 = vld [vmem:[%s773] sm:$0xff]
        %v830 = vld [vmem:[%s773 + $0x8] sm:$0xff]
        %v831 = vld [vmem:[%s773 + $0x10] sm:$0xff]
        %v832 = vld [vmem:[%s773 + $0x18] sm:$0xff]
        %v833 = vld [vmem:[%s773 + $0x20] sm:$0xff]
        %v834 = vld [vmem:[%s773 + $0x28] sm:$0xff]
        %v835 = vld [vmem:[%s773 + $0x30] sm:$0xff]
        %v836 = vld [vmem:[%s773 + $0x38] sm:$0xff]
        %v837 = vld [vmem:[%s773 + $0x40] sm:$0xff]
        %v838 = vld [vmem:[%s773 + $0x48] sm:$0xff]
        %v839 = vld [vmem:[%s773 + $0x50] sm:$0xff]
        %v840 = vld [vmem:[%s773 + $0x58] sm:$0xff]
        %v841 = vld [vmem:[%s773 + $0x60] sm:$0xff]
        %v842 = vld [vmem:[%s773 + $0x68] sm:$0xff]
        %v843 = vld [vmem:[%s773 + $0x70] sm:$0xff]
        %v844 = vld [vmem:[%s773 + $0x78] sm:$0xff]
        %v845 = vld [vmem:[%s777] sm:$0x1f]
        %v846 = vld [vmem:[%s824] sm:$0x1]
        %v847 = vld [vmem:[%s827] sm:$0x1]
        %848 = vmatprep.subr.mxu0 0.0
        %849 = vmatpush1.msra.mxu0 %v844
        %850 = vmatprep.subr.mxu0 0.0
        %851 = vmatpush1.msra.mxu0 %v843
        %852 = vmatprep.subr.mxu0 0.0
        %853 = vmatpush1.msra.mxu0 %v842
        %854 = vmatprep.subr.mxu0 0.0
        %855 = vmatpush1.msra.mxu0 %v841
        %856 = vmatprep.subr.mxu0 0.0
        %857 = vmatpush1.msra.mxu0 %v840
        %858 = vmatprep.subr.mxu0 0.0
        %859 = vmatpush1.msra.mxu0 %v839
        %860 = vmatprep.subr.mxu0 0.0
        %861 = vmatpush1.msra.mxu0 %v838
        %862 = vmatprep.subr.mxu0 0.0
        %863 = vmatpush1.msra.mxu0 %v837
        %864 = vmatprep.subr.mxu0 0.0
        %865 = vmatpush1.msra.mxu0 %v836
        %866 = vmatprep.subr.mxu0 0.0
        %867 = vmatpush1.msra.mxu0 %v835
        %868 = vmatprep.subr.mxu0 0.0
        %869 = vmatpush1.msra.mxu0 %v834
        %870 = vmatprep.subr.mxu0 0.0
        %871 = vmatpush1.msra.mxu0 %v833
        %872 = vmatprep.subr.mxu0 0.0
        %873 = vmatpush1.msra.mxu0 %v832
        %874 = vmatprep.subr.mxu0 0.0
        %875 = vmatpush1.msra.mxu0 %v831
        %876 = vmatprep.subr.mxu0 0.0
        %877 = vmatpush1.msra.mxu0 %v830
        %878 = vmatprep.subr.mxu0 0.0
        %879 = vmatpush1.msra.mxu0 %v829
        %880 = vmatprep.subr.mxu0 0.0
        %881 = vmatpush2.msra.mxu0 0.0
        %882 = vmatprep.subr.mxu0 0.0
        %883 = vmatpush2.msra.mxu0 0.0
        %884 = vmatprep.subr.mxu0 0.0
        %885 = vmatpush2.msra.mxu0 0.0
        %886 = vmatprep.subr.mxu0 0.0
        %887 = vmatpush2.msra.mxu0 0.0
        %888 = vmatprep.subr.mxu0 0.0
        %889 = vmatpush2.msra.mxu0 0.0
        %890 = vmatprep.subr.mxu0 0.0
        %891 = vmatpush2.msra.mxu0 0.0
        %892 = vmatprep.subr.mxu0 0.0
        %893 = vmatpush2.msra.mxu0 0.0
        %894 = vmatprep.subr.mxu0 0.0
        %895 = vmatpush2.msra.mxu0 0.0
        %896 = vmatprep.subr.mxu0 0.0
        %897 = vmatpush2.msra.mxu0 0.0
        %898 = vmatprep.subr.mxu0 0.0
        %899 = vmatpush2.msra.mxu0 0.0
        %900 = vmatprep.subr.mxu0 0.0
        %901 = vmatpush2.msra.mxu0 0.0
        %902 = vmatprep.subr.mxu0 0.0
        %903 = vmatpush2.msra.mxu0 0.0
        %904 = vmatprep.subr.mxu0 0.0
        %905 = vmatpush2.msra.mxu0 0.0
        %906 = vmatprep.subr.mxu0 0.0
        %907 = vmatpush2.msra.mxu0 0.0
        %908 = vmatprep.subr.mxu0 0.0
        %909 = vmatpush2.msra.mxu0 0.0
        %910 = vmatprep.subr.mxu0 0.0
        %911 = vmatpush2.msra.mxu0 0.0
        %912 = vmatprep.mubr.f32.mxu0 0.0
        %913 = vmatmul.mubr.f32.gmra.mxu0 %v828
        %v914 = vpop.f32.mrf.mxu0
        %v915 = vadd.f32 %v845, %v914
        %v916 = vpop.f32.mrf.mxu0
        %917 = vdwg.mxu0
        %v918 = vld [vmem:[%s780] sm:$0x1]
        %v919 = vld [vmem:[%s783] sm:$0x1]
        %v920 = vld [vmem:[%s788] sm:$0xff]
        %v921 = vld [vmem:[%s788 + $0x8] sm:$0xff]
        %v922 = vld [vmem:[%s788 + $0x10] sm:$0xff]
        %v923 = vld [vmem:[%s788 + $0x18] sm:$0xff]
        %v924 = vld [vmem:[%s791] sm:$0x1]
        %v925 = vld [vmem:[%s796] sm:$0xff]
        %v926 = vld [vmem:[%s796 + $0x8] sm:$0xff]
        %v927 = vld [vmem:[%s796 + $0x10] sm:$0xff]
        %v928 = vld [vmem:[%s796 + $0x18] sm:$0xff]
        %v929 = vld [vmem:[%s799] sm:$0x1]
        %v930 = vld [vmem:[%s802] sm:$0x1]
        %v931 = vld [vmem:[%s805] sm:$0x1]
        %v932 = vld [vmem:[%s810] sm:$0xff]
        %v933 = vld [vmem:[%s810 + $0x8] sm:$0xff]
        %v934 = vld [vmem:[%s810 + $0x10] sm:$0xff]
        %v935 = vld [vmem:[%s810 + $0x18] sm:$0xff]
        %v936 = vld [vmem:[%s813] sm:$0x1]
        %v937 = vld [vmem:[%s818] sm:$0xff]
        %v938 = vld [vmem:[%s818 + $0x8] sm:$0xff]
        %v939 = vld [vmem:[%s818 + $0x10] sm:$0xff]
        %v940 = vld [vmem:[%s818 + $0x18] sm:$0xff]
        %v941 = vld [vmem:[%s818 + $0x20] sm:$0xff]
        %v942 = vld [vmem:[%s818 + $0x28] sm:$0xff]
        %v943 = vld [vmem:[%s818 + $0x30] sm:$0xff]
        %v944 = vld [vmem:[%s818 + $0x38] sm:$0xff]
        %v945 = vld [vmem:[%s821] sm:$0x1]
        %vm946 = vcmask 258048
        %v947 = vsel %vm946, %v915, 0.0
        %948 = vadd.xlane.f32.xlu0 %v947
        %v949 = vpop.xlane.xlu0 %948
        %v950 = vrcp.pop 32.0
        %v951 = vmul.f32 %v949, %v950
        %v952 = vsub.f32 %v915, %v951
        %v953 = vmul.f32 %v952, %v952
        %v954 = vsel %vm946, %v953, 0.0
        %955 = vadd.xlane.f32.xlu0 %v954
        %v956 = vpop.xlane.xlu0 %955
        %v957 = vmul.f32 %v956, %v950
        %v958 = vadd.f32 %v957, 1e-05
        %v959 = vrsqrt.pop %v958
        %v960 = vmul.f32 %v952, %v959
        %v962 = vlaneseq
        %v963 = vshrl.u32 %v962, 7
        %v964 = vsub.s32 0, %v963
        %v965 = vrot.slane %v918, %v964
        %v967 = vmul.f32 %v960, %v965
        %v969 = vlaneseq
        %v970 = vshrl.u32 %v969, 7
        %v971 = vsub.s32 0, %v970
        %v972 = vrot.slane %v919, %v971
        %v974 = vadd.f32 %v967, %v972
        %v976 = vlaneseq
        %v977 = vshrl.u32 %v976, 7
        %v978 = vsub.s32 0, %v977
        %v979 = vrot.slane %v924, %v978
        %vm981 = vcmask 261120
        %v983 = vsel %vm981, %v974, 0
        %985 = vmatprep.subr.mxu0 0.0
        %986 = vmatpush1.msra.mxu0 0.0
        %987 = vmatprep.subr.mxu0 0.0
        %988 = vmatpush1.msra.mxu0 0.0
        %989 = vmatprep.subr.mxu0 0.0
        %990 = vmatpush1.msra.mxu0 0.0
        %991 = vmatprep.subr.mxu0 0.0
        %992 = vmatpush1.msra.mxu0 0.0
        %993 = vmatprep.subr.mxu0 0.0
        %994 = vmatpush1.msra.mxu0 0.0
        %995 = vmatprep.subr.mxu0 0.0
        %996 = vmatpush1.msra.mxu0 0.0
        %997 = vmatprep.subr.mxu0 0.0
        %998 = vmatpush1.msra.mxu0 0.0
        %999 = vmatprep.subr.mxu0 0.0
        %1000 = vmatpush1.msra.mxu0 0.0
        %1001 = vmatprep.subr.mxu0 0.0
        %1002 = vmatpush1.msra.mxu0 0.0
        %1003 = vmatprep.subr.mxu0 0.0
        %1004 = vmatpush1.msra.mxu0 0.0
        %1005 = vmatprep.subr.mxu0 0.0
        %1006 = vmatpush1.msra.mxu0 0.0
        %1007 = vmatprep.subr.mxu0 0.0
        %1008 = vmatpush1.msra.mxu0 0.0
        %1009 = vmatprep.subr.mxu0 0.0
        %1010 = vmatpush1.msra.mxu0 %v923
        %1011 = vmatprep.subr.mxu0 0.0
        %1012 = vmatpush1.msra.mxu0 %v922
        %1013 = vmatprep.subr.mxu0 0.0
        %1014 = vmatpush1.msra.mxu0 %v921
        %1015 = vmatprep.subr.mxu0 0.0
        %1016 = vmatpush1.msra.mxu0 %v920
        %1017 = vmatprep.subr.mxu0 0.0
        %1018 = vmatpush2.msra.mxu0 0.0
        %1019 = vmatprep.subr.mxu0 0.0
        %1020 = vmatpush2.msra.mxu0 0.0
        %1021 = vmatprep.subr.mxu0 0.0
        %1022 = vmatpush2.msra.mxu0 0.0
        %1023 = vmatprep.subr.mxu0 0.0
        %1024 = vmatpush2.msra.mxu0 0.0
        %1025 = vmatprep.subr.mxu0 0.0
        %1026 = vmatpush2.msra.mxu0 0.0
        %1027 = vmatprep.subr.mxu0 0.0
        %1028 = vmatpush2.msra.mxu0 0.0
        %1029 = vmatprep.subr.mxu0 0.0
        %1030 = vmatpush2.msra.mxu0 0.0
        %1031 = vmatprep.subr.mxu0 0.0
        %1032 = vmatpush2.msra.mxu0 0.0
        %1033 = vmatprep.subr.mxu0 0.0
        %1034 = vmatpush2.msra.mxu0 0.0
        %1035 = vmatprep.subr.mxu0 0.0
        %1036 = vmatpush2.msra.mxu0 0.0
        %1037 = vmatprep.subr.mxu0 0.0
        %1038 = vmatpush2.msra.mxu0 0.0
        %1039 = vmatprep.subr.mxu0 0.0
        %1040 = vmatpush2.msra.mxu0 0.0
        %1041 = vmatprep.subr.mxu0 0.0
        %1042 = vmatpush2.msra.mxu0 0.0
        %1043 = vmatprep.subr.mxu0 0.0
        %1044 = vmatpush2.msra.mxu0 0.0
        %1045 = vmatprep.subr.mxu0 0.0
        %1046 = vmatpush2.msra.mxu0 0.0
        %1047 = vmatprep.subr.mxu0 0.0
        %1048 = vmatpush2.msra.mxu0 0.0
        %1049 = vmatprep.mubr.f32.mxu0 0.0
        %1050 = vmatmul.mubr.f32.gmra.mxu0 %v983
        %v1051 = vpop.f32.mrf.mxu0
        %v1052 = vadd.f32 %v979, %v1051
        %v1053 = vpop.f32.mrf.mxu0
        %1054 = vdwg.mxu0
        %1056 = vrot.lane.b32.xlu0 %v1052, 96
        %v1057 = vpop.permute.xlu0 %1056
        %vm1058 = vcmask 64512
        %v1059 = vsel %vm1058, %v1052, 0
        %v1061 = vsel %vm1058, %v1057, 0
        %1063 = vmatprep.subr.mxu0 0.0
        %1064 = vmatpush1.xpose.msra.mxu0 0.0
        %1065 = vmatprep.subr.mxu0 0.0
        %1066 = vmatpush1.xpose.msra.mxu0 0.0
        %1067 = vmatprep.subr.mxu0 0.0
        %1068 = vmatpush1.xpose.msra.mxu0 0.0
        %1069 = vmatprep.subr.mxu0 0.0
        %1070 = vmatpush1.xpose.msra.mxu0 0.0
        %1071 = vmatprep.subr.mxu0 0.0
        %1072 = vmatpush1.xpose.msra.mxu0 0.0
        %1073 = vmatprep.subr.mxu0 0.0
        %1074 = vmatpush1.xpose.msra.mxu0 0.0
        %1075 = vmatprep.subr.mxu0 0.0
        %1076 = vmatpush1.xpose.msra.mxu0 0.0
        %1077 = vmatprep.subr.mxu0 0.0
        %1078 = vmatpush1.xpose.msra.mxu0 0.0
        %1079 = vmatprep.subr.mxu0 0.0
        %1080 = vmatpush1.xpose.msra.mxu0 0.0
        %1081 = vmatprep.subr.mxu0 0.0
        %1082 = vmatpush1.xpose.msra.mxu0 0.0
        %1083 = vmatprep.subr.mxu0 0.0
        %1084 = vmatpush1.xpose.msra.mxu0 0.0
        %1085 = vmatprep.subr.mxu0 0.0
        %1086 = vmatpush1.xpose.msra.mxu0 0.0
        %1087 = vmatprep.subr.mxu0 0.0
        %1088 = vmatpush1.xpose.msra.mxu0 0.0
        %1089 = vmatprep.subr.mxu0 0.0
        %1090 = vmatpush1.xpose.msra.mxu0 0.0
        %1091 = vmatprep.subr.mxu0 0.0
        %1092 = vmatpush1.xpose.msra.mxu0 0.0
        %1093 = vmatprep.subr.mxu0 0.0
        %1094 = vmatpush1.xpose.msra.mxu0 %v1061
        %1095 = vmatprep.subr.mxu0 0.0
        %1096 = vmatpush2.xpose.msra.mxu0 0.0
        %1097 = vmatprep.subr.mxu0 0.0
        %1098 = vmatpush2.xpose.msra.mxu0 0.0
        %1099 = vmatprep.subr.mxu0 0.0
        %1100 = vmatpush2.xpose.msra.mxu0 0.0
        %1101 = vmatprep.subr.mxu0 0.0
        %1102 = vmatpush2.xpose.msra.mxu0 0.0
        %1103 = vmatprep.subr.mxu0 0.0
        %1104 = vmatpush2.xpose.msra.mxu0 0.0
        %1105 = vmatprep.subr.mxu0 0.0
        %1106 = vmatpush2.xpose.msra.mxu0 0.0
        %1107 = vmatprep.subr.mxu0 0.0
        %1108 = vmatpush2.xpose.msra.mxu0 0.0
        %1109 = vmatprep.subr.mxu0 0.0
        %1110 = vmatpush2.xpose.msra.mxu0 0.0
        %1111 = vmatprep.subr.mxu0 0.0
        %1112 = vmatpush2.xpose.msra.mxu0 0.0
        %1113 = vmatprep.subr.mxu0 0.0
        %1114 = vmatpush2.xpose.msra.mxu0 0.0
        %1115 = vmatprep.subr.mxu0 0.0
        %1116 = vmatpush2.xpose.msra.mxu0 0.0
        %1117 = vmatprep.subr.mxu0 0.0
        %1118 = vmatpush2.xpose.msra.mxu0 0.0
        %1119 = vmatprep.subr.mxu0 0.0
        %1120 = vmatpush2.xpose.msra.mxu0 0.0
        %1121 = vmatprep.subr.mxu0 0.0
        %1122 = vmatpush2.xpose.msra.mxu0 0.0
        %1123 = vmatprep.subr.mxu0 0.0
        %1124 = vmatpush2.xpose.msra.mxu0 0.0
        %1125 = vmatprep.subr.mxu0 0.0
        %1126 = vmatpush2.xpose.msra.mxu0 0.0
        %1127 = vmatprep.mubr.f32.mxu0 0.0
        %1128 = vmatmul.mubr.f32.gmra.mxu0 %v1059
        %v1129 = vpop.f32.mrf.mxu0
        %v1130 = vadd.f32 0.0, %v1129
        %v1131 = vpop.f32.mrf.mxu0
        %1132 = vdwg.mxu0
        %vm1133 = vcmask 36864
        %v1134 = vsel %vm1133, %v1130, -inf
        %1135 = vmax.xlane.f32.xlu0 %v1134
        %v1136 = vpop.xlane.xlu0 %1135
        %v1137 = vsub.f32 %v1130, %v1136
        %v1138 = vmul.f32 %v1137, 1.442695
        %v1139 = vpow.pop %v1138
        %v1140 = vsel %vm1133, %v1139, 0.0
        %1141 = vadd.xlane.f32.xlu0 %v1140
        %v1142 = vpop.xlane.xlu0 %1141
        %v1143 = vrcp.pop %v1142
        %v1144 = vmul.f32 %v1139, %v1143
        %1145 = vrot.lane.b32.xlu0 %v1052, 64
        %v1146 = vpop.permute.xlu0 %1145
        %vm1147 = vcmask 39936
        %v1149 = vsel %vm1147, %v1144, 0
        %vm1151 = vcmask 1044480
        %v1152 = vsel %vm1151, %v1146, 0
        %1154 = vmatprep.subr.mxu0 0.0
        %1155 = vmatpush1.msra.mxu0 0.0
        %1156 = vmatprep.subr.mxu0 0.0
        %1157 = vmatpush1.msra.mxu0 0.0
        %1158 = vmatprep.subr.mxu0 0.0
        %1159 = vmatpush1.msra.mxu0 0.0
        %1160 = vmatprep.subr.mxu0 0.0
        %1161 = vmatpush1.msra.mxu0 0.0
        %1162 = vmatprep.subr.mxu0 0.0
        %1163 = vmatpush1.msra.mxu0 0.0
        %1164 = vmatprep.subr.mxu0 0.0
        %1165 = vmatpush1.msra.mxu0 0.0
        %1166 = vmatprep.subr.mxu0 0.0
        %1167 = vmatpush1.msra.mxu0 0.0
        %1168 = vmatprep.subr.mxu0 0.0
        %1169 = vmatpush1.msra.mxu0 0.0
        %1170 = vmatprep.subr.mxu0 0.0
        %1171 = vmatpush1.msra.mxu0 0.0
        %1172 = vmatprep.subr.mxu0 0.0
        %1173 = vmatpush1.msra.mxu0 0.0
        %1174 = vmatprep.subr.mxu0 0.0
        %1175 = vmatpush1.msra.mxu0 0.0
        %1176 = vmatprep.subr.mxu0 0.0
        %1177 = vmatpush1.msra.mxu0 0.0
        %1178 = vmatprep.subr.mxu0 0.0
        %1179 = vmatpush1.msra.mxu0 0.0
        %1180 = vmatprep.subr.mxu0 0.0
        %1181 = vmatpush1.msra.mxu0 0.0
        %1182 = vmatprep.subr.mxu0 0.0
        %1183 = vmatpush1.msra.mxu0 0.0
        %1184 = vmatprep.subr.mxu0 0.0
        %1185 = vmatpush1.msra.mxu0 %v1152
        %1186 = vmatprep.subr.mxu0 0.0
        %1187 = vmatpush2.msra.mxu0 0.0
        %1188 = vmatprep.subr.mxu0 0.0
        %1189 = vmatpush2.msra.mxu0 0.0
        %1190 = vmatprep.subr.mxu0 0.0
        %1191 = vmatpush2.msra.mxu0 0.0
        %1192 = vmatprep.subr.mxu0 0.0
        %1193 = vmatpush2.msra.mxu0 0.0
        %1194 = vmatprep.subr.mxu0 0.0
        %1195 = vmatpush2.msra.mxu0 0.0
        %1196 = vmatprep.subr.mxu0 0.0
        %1197 = vmatpush2.msra.mxu0 0.0
        %1198 = vmatprep.subr.mxu0 0.0
        %1199 = vmatpush2.msra.mxu0 0.0
        %1200 = vmatprep.subr.mxu0 0.0
        %1201 = vmatpush2.msra.mxu0 0.0
        %1202 = vmatprep.subr.mxu0 0.0
        %1203 = vmatpush2.msra.mxu0 0.0
        %1204 = vmatprep.subr.mxu0 0.0
        %1205 = vmatpush2.msra.mxu0 0.0
        %1206 = vmatprep.subr.mxu0 0.0
        %1207 = vmatpush2.msra.mxu0 0.0
        %1208 = vmatprep.subr.mxu0 0.0
        %1209 = vmatpush2.msra.mxu0 0.0
        %1210 = vmatprep.subr.mxu0 0.0
        %1211 = vmatpush2.msra.mxu0 0.0
        %1212 = vmatprep.subr.mxu0 0.0
        %1213 = vmatpush2.msra.mxu0 0.0
        %1214 = vmatprep.subr.mxu0 0.0
        %1215 = vmatpush2.msra.mxu0 0.0
        %1216 = vmatprep.subr.mxu0 0.0
        %1217 = vmatpush2.msra.mxu0 0.0
        %1218 = vmatprep.mubr.f32.mxu0 0.0
        %1219 = vmatmul.mubr.f32.gmra.mxu0 %v1149
        %v1220 = vpop.f32.mrf.mxu0
        %v1221 = vadd.f32 0.0, %v1220
        %v1222 = vpop.f32.mrf.mxu0
        %1223 = vdwg.mxu0
        %1224 = vrot.lane.b32.xlu0 %v1052, 120
        %v1225 = vpop.permute.xlu0 %1224
        %1226 = vrot.lane.b32.xlu0 %v1052, 88
        %v1227 = vpop.permute.xlu0 %1226
        %v1228 = vsel %vm1058, %v1225, 0
        %v1230 = vsel %vm1058, %v1227, 0
        %1232 = vmatprep.subr.mxu0 0.0
        %1233 = vmatpush1.xpose.msra.mxu0 0.0
        %1234 = vmatprep.subr.mxu0 0.0
        %1235 = vmatpush1.xpose.msra.mxu0 0.0
        %1236 = vmatprep.subr.mxu0 0.0
        %1237 = vmatpush1.xpose.msra.mxu0 0.0
        %1238 = vmatprep.subr.mxu0 0.0
        %1239 = vmatpush1.xpose.msra.mxu0 0.0
        %1240 = vmatprep.subr.mxu0 0.0
        %1241 = vmatpush1.xpose.msra.mxu0 0.0
        %1242 = vmatprep.subr.mxu0 0.0
        %1243 = vmatpush1.xpose.msra.mxu0 0.0
        %1244 = vmatprep.subr.mxu0 0.0
        %1245 = vmatpush1.xpose.msra.mxu0 0.0
        %1246 = vmatprep.subr.mxu0 0.0
        %1247 = vmatpush1.xpose.msra.mxu0 0.0
        %1248 = vmatprep.subr.mxu0 0.0
        %1249 = vmatpush1.xpose.msra.mxu0 0.0
        %1250 = vmatprep.subr.mxu0 0.0
        %1251 = vmatpush1.xpose.msra.mxu0 0.0
        %1252 = vmatprep.subr.mxu0 0.0
        %1253 = vmatpush1.xpose.msra.mxu0 0.0
        %1254 = vmatprep.subr.mxu0 0.0
        %1255 = vmatpush1.xpose.msra.mxu0 0.0
        %1256 = vmatprep.subr.mxu0 0.0
        %1257 = vmatpush1.xpose.msra.mxu0 0.0
        %1258 = vmatprep.subr.mxu0 0.0
        %1259 = vmatpush1.xpose.msra.mxu0 0.0
        %1260 = vmatprep.subr.mxu0 0.0
        %1261 = vmatpush1.xpose.msra.mxu0 0.0
        %1262 = vmatprep.subr.mxu0 0.0
        %1263 = vmatpush1.xpose.msra.mxu0 %v1230
        %1264 = vmatprep.subr.mxu0 0.0
        %1265 = vmatpush2.xpose.msra.mxu0 0.0
        %1266 = vmatprep.subr.mxu0 0.0
        %1267 = vmatpush2.xpose.msra.mxu0 0.0
        %1268 = vmatprep.subr.mxu0 0.0
        %1269 = vmatpush2.xpose.msra.mxu0 0.0
        %1270 = vmatprep.subr.mxu0 0.0
        %1271 = vmatpush2.xpose.msra.mxu0 0.0
        %1272 = vmatprep.subr.mxu0 0.0
        %1273 = vmatpush2.xpose.msra.mxu0 0.0
        %1274 = vmatprep.subr.mxu0 0.0
        %1275 = vmatpush2.xpose.msra.mxu0 0.0
        %1276 = vmatprep.subr.mxu0 0.0
        %1277 = vmatpush2.xpose.msra.mxu0 0.0
        %1278 = vmatprep.subr.mxu0 0.0
        %1279 = vmatpush2.xpose.msra.mxu0 0.0
        %1280 = vmatprep.subr.mxu0 0.0
        %1281 = vmatpush2.xpose.msra.mxu0 0.0
        %1282 = vmatprep.subr.mxu0 0.0
        %1283 = vmatpush2.xpose.msra.mxu0 0.0
        %1284 = vmatprep.subr.mxu0 0.0
        %1285 = vmatpush2.xpose.msra.mxu0 0.0
        %1286 = vmatprep.subr.mxu0 0.0
        %1287 = vmatpush2.xpose.msra.mxu0 0.0
        %1288 = vmatprep.subr.mxu0 0.0
        %1289 = vmatpush2.xpose.msra.mxu0 0.0
        %1290 = vmatprep.subr.mxu0 0.0
        %1291 = vmatpush2.xpose.msra.mxu0 0.0
        %1292 = vmatprep.subr.mxu0 0.0
        %1293 = vmatpush2.xpose.msra.mxu0 0.0
        %1294 = vmatprep.subr.mxu0 0.0
        %1295 = vmatpush2.xpose.msra.mxu0 0.0
        %1296 = vmatprep.mubr.f32.mxu0 0.0
        %1297 = vmatmul.mubr.f32.gmra.mxu0 %v1228
        %v1298 = vpop.f32.mrf.mxu0
        %v1299 = vadd.f32 0.0, %v1298
        %v1300 = vpop.f32.mrf.mxu0
        %1301 = vdwg.mxu0
        %v1302 = vsel %vm1133, %v1299, -inf
        %1303 = vmax.xlane.f32.xlu0 %v1302
        %v1304 = vpop.xlane.xlu0 %1303
        %v1305 = vsub.f32 %v1299, %v1304
        %v1306 = vmul.f32 %v1305, 1.442695
        %v1307 = vpow.pop %v1306
        %v1308 = vsel %vm1133, %v1307, 0.0
        %1309 = vadd.xlane.f32.xlu0 %v1308
        %v1310 = vpop.xlane.xlu0 %1309
        %v1311 = vrcp.pop %v1310
        %v1312 = vmul.f32 %v1307, %v1311
        %1313 = vrot.lane.b32.xlu0 %v1052, 56
        %v1314 = vpop.permute.xlu0 %1313
        %v1316 = vsel %vm1147, %v1312, 0
        %v1318 = vsel %vm1151, %v1314, 0
        %1320 = vmatprep.subr.mxu0 0.0
        %1321 = vmatpush1.msra.mxu0 0.0
        %1322 = vmatprep.subr.mxu0 0.0
        %1323 = vmatpush1.msra.mxu0 0.0
        %1324 = vmatprep.subr.mxu0 0.0
        %1325 = vmatpush1.msra.mxu0 0.0
        %1326 = vmatprep.subr.mxu0 0.0
        %1327 = vmatpush1.msra.mxu0 0.0
        %1328 = vmatprep.subr.mxu0 0.0
        %1329 = vmatpush1.msra.mxu0 0.0
        %1330 = vmatprep.subr.mxu0 0.0
        %1331 = vmatpush1.msra.mxu0 0.0
        %1332 = vmatprep.subr.mxu0 0.0
        %1333 = vmatpush1.msra.mxu0 0.0
        %1334 = vmatprep.subr.mxu0 0.0
        %1335 = vmatpush1.msra.mxu0 0.0
        %1336 = vmatprep.subr.mxu0 0.0
        %1337 = vmatpush1.msra.mxu0 0.0
        %1338 = vmatprep.subr.mxu0 0.0
        %1339 = vmatpush1.msra.mxu0 0.0
        %1340 = vmatprep.subr.mxu0 0.0
        %1341 = vmatpush1.msra.mxu0 0.0
        %1342 = vmatprep.subr.mxu0 0.0
        %1343 = vmatpush1.msra.mxu0 0.0
        %1344 = vmatprep.subr.mxu0 0.0
        %1345 = vmatpush1.msra.mxu0 0.0
        %1346 = vmatprep.subr.mxu0 0.0
        %1347 = vmatpush1.msra.mxu0 0.0
        %1348 = vmatprep.subr.mxu0 0.0
        %1349 = vmatpush1.msra.mxu0 0.0
        %1350 = vmatprep.subr.mxu0 0.0
        %1351 = vmatpush1.msra.mxu0 %v1318
        %1352 = vmatprep.subr.mxu0 0.0
        %1353 = vmatpush2.msra.mxu0 0.0
        %1354 = vmatprep.subr.mxu0 0.0
        %1355 = vmatpush2.msra.mxu0 0.0
        %1356 = vmatprep.subr.mxu0 0.0
        %1357 = vmatpush2.msra.mxu0 0.0
        %1358 = vmatprep.subr.mxu0 0.0
        %1359 = vmatpush2.msra.mxu0 0.0
        %1360 = vmatprep.subr.mxu0 0.0
        %1361 = vmatpush2.msra.mxu0 0.0
        %1362 = vmatprep.subr.mxu0 0.0
        %1363 = vmatpush2.msra.mxu0 0.0
        %1364 = vmatprep.subr.mxu0 0.0
        %1365 = vmatpush2.msra.mxu0 0.0
        %1366 = vmatprep.subr.mxu0 0.0
        %1367 = vmatpush2.msra.mxu0 0.0
        %1368 = vmatprep.subr.mxu0 0.0
        %1369 = vmatpush2.msra.mxu0 0.0
        %1370 = vmatprep.subr.mxu0 0.0
        %1371 = vmatpush2.msra.mxu0 0.0
        %1372 = vmatprep.subr.mxu0 0.0
        %1373 = vmatpush2.msra.mxu0 0.0
        %1374 = vmatprep.subr.mxu0 0.0
        %1375 = vmatpush2.msra.mxu0 0.0
        %1376 = vmatprep.subr.mxu0 0.0
        %1377 = vmatpush2.msra.mxu0 0.0
        %1378 = vmatprep.subr.mxu0 0.0
        %1379 = vmatpush2.msra.mxu0 0.0
        %1380 = vmatprep.subr.mxu0 0.0
        %1381 = vmatpush2.msra.mxu0 0.0
        %1382 = vmatprep.subr.mxu0 0.0
        %1383 = vmatpush2.msra.mxu0 0.0
        %1384 = vmatprep.mubr.f32.mxu0 0.0
        %1385 = vmatmul.mubr.f32.gmra.mxu0 %v1316
        %v1386 = vpop.f32.mrf.mxu0
        %v1387 = vadd.f32 0.0, %v1386
        %v1388 = vpop.f32.mrf.mxu0
        %1389 = vdwg.mxu0
        %v1391 = vsel %vm1058, %v1387, 0
        %1393 = vmatprep.subr.mxu0 0.0
        %1394 = vmatpush1.msra.mxu0 0.0
        %1395 = vmatprep.subr.mxu0 0.0
        %1396 = vmatpush1.msra.mxu0 0.0
        %1397 = vmatprep.subr.mxu0 0.0
        %1398 = vmatpush1.msra.mxu0 0.0
        %1399 = vmatprep.subr.mxu0 0.0
        %1400 = vmatpush1.msra.mxu0 0.0
        %1401 = vmatprep.subr.mxu0 0.0
        %1402 = vmatpush1.msra.mxu0 0.0
        %1403 = vmatprep.subr.mxu0 0.0
        %1404 = vmatpush1.msra.mxu0 0.0
        %1405 = vmatprep.subr.mxu0 0.0
        %1406 = vmatpush1.msra.mxu0 0.0
        %1407 = vmatprep.subr.mxu0 0.0
        %1408 = vmatpush1.msra.mxu0 0.0
        %1409 = vmatprep.subr.mxu0 0.0
        %1410 = vmatpush1.msra.mxu0 0.0
        %1411 = vmatprep.subr.mxu0 0.0
        %1412 = vmatpush1.msra.mxu0 0.0
        %1413 = vmatprep.subr.mxu0 0.0
        %1414 = vmatpush1.msra.mxu0 0.0
        %1415 = vmatprep.subr.mxu0 0.0
        %1416 = vmatpush1.msra.mxu0 0.0
        %1417 = vmatprep.subr.mxu0 0.0
        %1418 = vmatpush1.msra.mxu0 0.0
        %1419 = vmatprep.subr.mxu0 0.0
        %1420 = vmatpush1.msra.mxu0 0.0
        %1421 = vmatprep.subr.mxu0 0.0
        %1422 = vmatpush1.msra.mxu0 0.0
        %1423 = vmatprep.subr.mxu0 0.0
        %1424 = vmatpush1.msra.mxu0 %v926
        %1425 = vmatprep.subr.mxu0 0.0
        %1426 = vmatpush2.msra.mxu0 0.0
        %1427 = vmatprep.subr.mxu0 0.0
        %1428 = vmatpush2.msra.mxu0 0.0
        %1429 = vmatprep.subr.mxu0 0.0
        %1430 = vmatpush2.msra.mxu0 0.0
        %1431 = vmatprep.subr.mxu0 0.0
        %1432 = vmatpush2.msra.mxu0 0.0
        %1433 = vmatprep.subr.mxu0 0.0
        %1434 = vmatpush2.msra.mxu0 0.0
        %1435 = vmatprep.subr.mxu0 0.0
        %1436 = vmatpush2.msra.mxu0 0.0
        %1437 = vmatprep.subr.mxu0 0.0
        %1438 = vmatpush2.msra.mxu0 0.0
        %1439 = vmatprep.subr.mxu0 0.0
        %1440 = vmatpush2.msra.mxu0 0.0
        %1441 = vmatprep.subr.mxu0 0.0
        %1442 = vmatpush2.msra.mxu0 0.0
        %1443 = vmatprep.subr.mxu0 0.0
        %1444 = vmatpush2.msra.mxu0 0.0
        %1445 = vmatprep.subr.mxu0 0.0
        %1446 = vmatpush2.msra.mxu0 0.0
        %1447 = vmatprep.subr.mxu0 0.0
        %1448 = vmatpush2.msra.mxu0 0.0
        %1449 = vmatprep.subr.mxu0 0.0
        %1450 = vmatpush2.msra.mxu0 0.0
        %1451 = vmatprep.subr.mxu0 0.0
        %1452 = vmatpush2.msra.mxu0 0.0
        %1453 = vmatprep.subr.mxu0 0.0
        %1454 = vmatpush2.msra.mxu0 0.0
        %1455 = vmatprep.subr.mxu0 0.0
        %1456 = vmatpush2.msra.mxu0 0.0
        %1457 = vmatprep.mubr.f32.mxu0 0.0
        %1458 = vmatmul.mubr.f32.gmra.mxu0 %v1391
        %v1459 = vpop.f32.mrf.mxu0
        %v1460 = vadd.f32 0.0, %v1459
        %v1461 = vpop.f32.mrf.mxu0
        %1462 = vdwg.mxu0
        %v1464 = vsel %vm1058, %v1221, 0
        %1466 = vmatprep.subr.mxu0 0.0
        %1467 = vmatpush1.msra.mxu0 0.0
        %1468 = vmatprep.subr.mxu0 0.0
        %1469 = vmatpush1.msra.mxu0 0.0
        %1470 = vmatprep.subr.mxu0 0.0
        %1471 = vmatpush1.msra.mxu0 0.0
        %1472 = vmatprep.subr.mxu0 0.0
        %1473 = vmatpush1.msra.mxu0 0.0
        %1474 = vmatprep.subr.mxu0 0.0
        %1475 = vmatpush1.msra.mxu0 0.0
        %1476 = vmatprep.subr.mxu0 0.0
        %1477 = vmatpush1.msra.mxu0 0.0
        %1478 = vmatprep.subr.mxu0 0.0
        %1479 = vmatpush1.msra.mxu0 0.0
        %1480 = vmatprep.subr.mxu0 0.0
        %1481 = vmatpush1.msra.mxu0 0.0
        %1482 = vmatprep.subr.mxu0 0.0
        %1483 = vmatpush1.msra.mxu0 0.0
        %1484 = vmatprep.subr.mxu0 0.0
        %1485 = vmatpush1.msra.mxu0 0.0
        %1486 = vmatprep.subr.mxu0 0.0
        %1487 = vmatpush1.msra.mxu0 0.0
        %1488 = vmatprep.subr.mxu0 0.0
        %1489 = vmatpush1.msra.mxu0 0.0
        %1490 = vmatprep.subr.mxu0 0.0
        %1491 = vmatpush1.msra.mxu0 0.0
        %1492 = vmatprep.subr.mxu0 0.0
        %1493 = vmatpush1.msra.mxu0 0.0
        %1494 = vmatprep.subr.mxu0 0.0
        %1495 = vmatpush1.msra.mxu0 0.0
        %1496 = vmatprep.subr.mxu0 0.0
        %1497 = vmatpush1.msra.mxu0 %v925
        %1498 = vmatprep.subr.mxu0 0.0
        %1499 = vmatpush2.msra.mxu0 0.0
        %1500 = vmatprep.subr.mxu0 0.0
        %1501 = vmatpush2.msra.mxu0 0.0
        %1502 = vmatprep.subr.mxu0 0.0
        %1503 = vmatpush2.msra.mxu0 0.0
        %1504 = vmatprep.subr.mxu0 0.0
        %1505 = vmatpush2.msra.mxu0 0.0
        %1506 = vmatprep.subr.mxu0 0.0
        %1507 = vmatpush2.msra.mxu0 0.0
        %1508 = vmatprep.subr.mxu0 0.0
        %1509 = vmatpush2.msra.mxu0 0.0
        %1510 = vmatprep.subr.mxu0 0.0
        %1511 = vmatpush2.msra.mxu0 0.0
        %1512 = vmatprep.subr.mxu0 0.0
        %1513 = vmatpush2.msra.mxu0 0.0
        %1514 = vmatprep.subr.mxu0 0.0
        %1515 = vmatpush2.msra.mxu0 0.0
        %1516 = vmatprep.subr.mxu0 0.0
        %1517 = vmatpush2.msra.mxu0 0.0
        %1518 = vmatprep.subr.mxu0 0.0
        %1519 = vmatpush2.msra.mxu0 0.0
        %1520 = vmatprep.subr.mxu0 0.0
        %1521 = vmatpush2.msra.mxu0 0.0
        %1522 = vmatprep.subr.mxu0 0.0
        %1523 = vmatpush2.msra.mxu0 0.0
        %1524 = vmatprep.subr.mxu0 0.0
        %1525 = vmatpush2.msra.mxu0 0.0
        %1526 = vmatprep.subr.mxu0 0.0
        %1527 = vmatpush2.msra.mxu0 0.0
        %1528 = vmatprep.subr.mxu0 0.0
        %1529 = vmatpush2.msra.mxu0 0.0
        %1530 = vmatprep.mubr.f32.mxu0 0.0
        %1531 = vmatmul.mubr.f32.gmra.mxu0 %v1464
        %v1532 = vpop.f32.mrf.mxu0
        %v1533 = vadd.f32 %v1460, %v1532
        %v1534 = vpop.f32.mrf.mxu0
        %1535 = vdwg.mxu0
        %1536 = vrot.lane.b32.xlu0 %v1052, 112
        %v1537 = vpop.permute.xlu0 %1536
        %1538 = vrot.lane.b32.xlu0 %v1052, 80
        %v1539 = vpop.permute.xlu0 %1538
        %v1540 = vsel %vm1058, %v1537, 0
        %v1542 = vsel %vm1058, %v1539, 0
        %1544 = vmatprep.subr.mxu0 0.0
        %1545 = vmatpush1.xpose.msra.mxu0 0.0
        %1546 = vmatprep.subr.mxu0 0.0
        %1547 = vmatpush1.xpose.msra.mxu0 0.0
        %1548 = vmatprep.subr.mxu0 0.0
        %1549 = vmatpush1.xpose.msra.mxu0 0.0
        %1550 = vmatprep.subr.mxu0 0.0
        %1551 = vmatpush1.xpose.msra.mxu0 0.0
        %1552 = vmatprep.subr.mxu0 0.0
        %1553 = vmatpush1.xpose.msra.mxu0 0.0
        %1554 = vmatprep.subr.mxu0 0.0
        %1555 = vmatpush1.xpose.msra.mxu0 0.0
        %1556 = vmatprep.subr.mxu0 0.0
        %1557 = vmatpush1.xpose.msra.mxu0 0.0
        %1558 = vmatprep.subr.mxu0 0.0
        %1559 = vmatpush1.xpose.msra.mxu0 0.0
        %1560 = vmatprep.subr.mxu0 0.0
        %1561 = vmatpush1.xpose.msra.mxu0 0.0
        %1562 = vmatprep.subr.mxu0 0.0
        %1563 = vmatpush1.xpose.msra.mxu0 0.0
        %1564 = vmatprep.subr.mxu0 0.0
        %1565 = vmatpush1.xpose.msra.mxu0 0.0
        %1566 = vmatprep.subr.mxu0 0.0
        %1567 = vmatpush1.xpose.msra.mxu0 0.0
        %1568 = vmatprep.subr.mxu0 0.0
        %1569 = vmatpush1.xpose.msra.mxu0 0.0
        %1570 = vmatprep.subr.mxu0 0.0
        %1571 = vmatpush1.xpose.msra.mxu0 0.0
        %1572 = vmatprep.subr.mxu0 0.0
        %1573 = vmatpush1.xpose.msra.mxu0 0.0
        %1574 = vmatprep.subr.mxu0 0.0
        %1575 = vmatpush1.xpose.msra.mxu0 %v1542
        %1576 = vmatprep.subr.mxu0 0.0
        %1577 = vmatpush2.xpose.msra.mxu0 0.0
        %1578 = vmatprep.subr.mxu0 0.0
        %1579 = vmatpush2.xpose.msra.mxu0 0.0
        %1580 = vmatprep.subr.mxu0 0.0
        %1581 = vmatpush2.xpose.msra.mxu0 0.0
        %1582 = vmatprep.subr.mxu0 0.0
        %1583 = vmatpush2.xpose.msra.mxu0 0.0
        %1584 = vmatprep.subr.mxu0 0.0
        %1585 = vmatpush2.xpose.msra.mxu0 0.0
        %1586 = vmatprep.subr.mxu0 0.0
        %1587 = vmatpush2.xpose.msra.mxu0 0.0
        %1588 = vmatprep.subr.mxu0 0.0
        %1589 = vmatpush2.xpose.msra.mxu0 0.0
        %1590 = vmatprep.subr.mxu0 0.0
        %1591 = vmatpush2.xpose.msra.mxu0 0.0
        %1592 = vmatprep.subr.mxu0 0.0
        %1593 = vmatpush2.xpose.msra.mxu0 0.0
        %1594 = vmatprep.subr.mxu0 0.0
        %1595 = vmatpush2.xpose.msra.mxu0 0.0
        %1596 = vmatprep.subr.mxu0 0.0
        %1597 = vmatpush2.xpose.msra.mxu0 0.0
        %1598 = vmatprep.subr.mxu0 0.0
        %1599 = vmatpush2.xpose.msra.mxu0 0.0
        %1600 = vmatprep.subr.mxu0 0.0
        %1601 = vmatpush2.xpose.msra.mxu0 0.0
        %1602 = vmatprep.subr.mxu0 0.0
        %1603 = vmatpush2.xpose.msra.mxu0 0.0
        %1604 = vmatprep.subr.mxu0 0.0
        %1605 = vmatpush2.xpose.msra.mxu0 0.0
        %1606 = vmatprep.subr.mxu0 0.0
        %1607 = vmatpush2.xpose.msra.mxu0 0.0
        %1608 = vmatprep.mubr.f32.mxu0 0.0
        %1609 = vmatmul.mubr.f32.gmra.mxu0 %v1540
        %v1610 = vpop.f32.mrf.mxu0
        %v1611 = vadd.f32 0.0, %v1610
        %v1612 = vpop.f32.mrf.mxu0
        %1613 = vdwg.mxu0
        %v1614 = vsel %vm1133, %v1611, -inf
        %1615 = vmax.xlane.f32.xlu0 %v1614
        %v1616 = vpop.xlane.xlu0 %1615
        %v1617 = vsub.f32 %v1611, %v1616
        %v1618 = vmul.f32 %v1617, 1.442695
        %v1619 = vpow.pop %v1618
        %v1620 = vsel %vm1133, %v1619, 0.0
        %1621 = vadd.xlane.f32.xlu0 %v1620
        %v1622 = vpop.xlane.xlu0 %1621
        %v1623 = vrcp.pop %v1622
        %v1624 = vmul.f32 %v1619, %v1623
        %1625 = vrot.lane.b32.xlu0 %v1052, 48
        %v1626 = vpop.permute.xlu0 %1625
        %v1628 = vsel %vm1147, %v1624, 0
        %v1630 = vsel %vm1151, %v1626, 0
        %1632 = vmatprep.subr.mxu0 0.0
        %1633 = vmatpush1.msra.mxu0 0.0
        %1634 = vmatprep.subr.mxu0 0.0
        %1635 = vmatpush1.msra.mxu0 0.0
        %1636 = vmatprep.subr.mxu0 0.0
        %1637 = vmatpush1.msra.mxu0 0.0
        %1638 = vmatprep.subr.mxu0 0.0
        %1639 = vmatpush1.msra.mxu0 0.0
        %1640 = vmatprep.subr.mxu0 0.0
        %1641 = vmatpush1.msra.mxu0 0.0
        %1642 = vmatprep.subr.mxu0 0.0
        %1643 = vmatpush1.msra.mxu0 0.0
        %1644 = vmatprep.subr.mxu0 0.0
        %1645 = vmatpush1.msra.mxu0 0.0
        %1646 = vmatprep.subr.mxu0 0.0
        %1647 = vmatpush1.msra.mxu0 0.0
        %1648 = vmatprep.subr.mxu0 0.0
        %1649 = vmatpush1.msra.mxu0 0.0
        %1650 = vmatprep.subr.mxu0 0.0
        %1651 = vmatpush1.msra.mxu0 0.0
        %1652 = vmatprep.subr.mxu0 0.0
        %1653 = vmatpush1.msra.mxu0 0.0
        %1654 = vmatprep.subr.mxu0 0.0
        %1655 = vmatpush1.msra.mxu0 0.0
        %1656 = vmatprep.subr.mxu0 0.0
        %1657 = vmatpush1.msra.mxu0 0.0
        %1658 = vmatprep.subr.mxu0 0.0
        %1659 = vmatpush1.msra.mxu0 0.0
        %1660 = vmatprep.subr.mxu0 0.0
        %1661 = vmatpush1.msra.mxu0 0.0
        %1662 = vmatprep.subr.mxu0 0.0
        %1663 = vmatpush1.msra.mxu0 %v1630
        %1664 = vmatprep.subr.mxu0 0.0
        %1665 = vmatpush2.msra.mxu0 0.0
        %1666 = vmatprep.subr.mxu0 0.0
        %1667 = vmatpush2.msra.mxu0 0.0
        %1668 = vmatprep.subr.mxu0 0.0
        %1669 = vmatpush2.msra.mxu0 0.0
        %1670 = vmatprep.subr.mxu0 0.0
        %1671 = vmatpush2.msra.mxu0 0.0
        %1672 = vmatprep.subr.mxu0 0.0
        %1673 = vmatpush2.msra.mxu0 0.0
        %1674 = vmatprep.subr.mxu0 0.0
        %1675 = vmatpush2.msra.mxu0 0.0
        %1676 = vmatprep.subr.mxu0 0.0
        %1677 = vmatpush2.msra.mxu0 0.0
        %1678 = vmatprep.subr.mxu0 0.0
        %1679 = vmatpush2.msra.mxu0 0.0
        %1680 = vmatprep.subr.mxu0 0.0
        %1681 = vmatpush2.msra.mxu0 0.0
        %1682 = vmatprep.subr.mxu0 0.0
        %1683 = vmatpush2.msra.mxu0 0.0
        %1684 = vmatprep.subr.mxu0 0.0
        %1685 = vmatpush2.msra.mxu0 0.0
        %1686 = vmatprep.subr.mxu0 0.0
        %1687 = vmatpush2.msra.mxu0 0.0
        %1688 = vmatprep.subr.mxu0 0.0
        %1689 = vmatpush2.msra.mxu0 0.0
        %1690 = vmatprep.subr.mxu0 0.0
        %1691 = vmatpush2.msra.mxu0 0.0
        %1692 = vmatprep.subr.mxu0 0.0
        %1693 = vmatpush2.msra.mxu0 0.0
        %1694 = vmatprep.subr.mxu0 0.0
        %1695 = vmatpush2.msra.mxu0 0.0
        %1696 = vmatprep.mubr.f32.mxu0 0.0
        %1697 = vmatmul.mubr.f32.gmra.mxu0 %v1628
        %v1698 = vpop.f32.mrf.mxu0
        %v1699 = vadd.f32 0.0, %v1698
        %v1700 = vpop.f32.mrf.mxu0
        %1701 = vdwg.mxu0
        %v1703 = vsel %vm1058, %v1699, 0
        %1705 = vmatprep.subr.mxu0 0.0
        %1706 = vmatpush1.msra.mxu0 0.0
        %1707 = vmatprep.subr.mxu0 0.0
        %1708 = vmatpush1.msra.mxu0 0.0
        %1709 = vmatprep.subr.mxu0 0.0
        %1710 = vmatpush1.msra.mxu0 0.0
        %1711 = vmatprep.subr.mxu0 0.0
        %1712 = vmatpush1.msra.mxu0 0.0
        %1713 = vmatprep.subr.mxu0 0.0
        %1714 = vmatpush1.msra.mxu0 0.0
        %1715 = vmatprep.subr.mxu0 0.0
        %1716 = vmatpush1.msra.mxu0 0.0
        %1717 = vmatprep.subr.mxu0 0.0
        %1718 = vmatpush1.msra.mxu0 0.0
        %1719 = vmatprep.subr.mxu0 0.0
        %1720 = vmatpush1.msra.mxu0 0.0
        %1721 = vmatprep.subr.mxu0 0.0
        %1722 = vmatpush1.msra.mxu0 0.0
        %1723 = vmatprep.subr.mxu0 0.0
        %1724 = vmatpush1.msra.mxu0 0.0
        %1725 = vmatprep.subr.mxu0 0.0
        %1726 = vmatpush1.msra.mxu0 0.0
        %1727 = vmatprep.subr.mxu0 0.0
        %1728 = vmatpush1.msra.mxu0 0.0
        %1729 = vmatprep.subr.mxu0 0.0
        %1730 = vmatpush1.msra.mxu0 0.0
        %1731 = vmatprep.subr.mxu0 0.0
        %1732 = vmatpush1.msra.mxu0 0.0
        %1733 = vmatprep.subr.mxu0 0.0
        %1734 = vmatpush1.msra.mxu0 0.0
        %1735 = vmatprep.subr.mxu0 0.0
        %1736 = vmatpush1.msra.mxu0 %v927
        %1737 = vmatprep.subr.mxu0 0.0
        %1738 = vmatpush2.msra.mxu0 0.0
        %1739 = vmatprep.subr.mxu0 0.0
        %1740 = vmatpush2.msra.mxu0 0.0
        %1741 = vmatprep.subr.mxu0 0.0
        %1742 = vmatpush2.msra.mxu0 0.0
        %1743 = vmatprep.subr.mxu0 0.0
        %1744 = vmatpush2.msra.mxu0 0.0
        %1745 = vmatprep.subr.mxu0 0.0
        %1746 = vmatpush2.msra.mxu0 0.0
        %1747 = vmatprep.subr.mxu0 0.0
        %1748 = vmatpush2.msra.mxu0 0.0
        %1749 = vmatprep.subr.mxu0 0.0
        %1750 = vmatpush2.msra.mxu0 0.0
        %1751 = vmatprep.subr.mxu0 0.0
        %1752 = vmatpush2.msra.mxu0 0.0
        %1753 = vmatprep.subr.mxu0 0.0
        %1754 = vmatpush2.msra.mxu0 0.0
        %1755 = vmatprep.subr.mxu0 0.0
        %1756 = vmatpush2.msra.mxu0 0.0
        %1757 = vmatprep.subr.mxu0 0.0
        %1758 = vmatpush2.msra.mxu0 0.0
        %1759 = vmatprep.subr.mxu0 0.0
        %1760 = vmatpush2.msra.mxu0 0.0
        %1761 = vmatprep.subr.mxu0 0.0
        %1762 = vmatpush2.msra.mxu0 0.0
        %1763 = vmatprep.subr.mxu0 0.0
        %1764 = vmatpush2.msra.mxu0 0.0
        %1765 = vmatprep.subr.mxu0 0.0
        %1766 = vmatpush2.msra.mxu0 0.0
        %1767 = vmatprep.subr.mxu0 0.0
        %1768 = vmatpush2.msra.mxu0 0.0
        %1769 = vmatprep.mubr.f32.mxu0 0.0
        %1770 = vmatmul.mubr.f32.gmra.mxu0 %v1703
        %v1771 = vpop.f32.mrf.mxu0
        %v1772 = vadd.f32 0.0, %v1771
        %v1773 = vpop.f32.mrf.mxu0
        %1774 = vdwg.mxu0
        %v1775 = vadd.f32 %v1533, %v1772
        %1776 = vrot.lane.b32.xlu0 %v1052, 104
        %v1777 = vpop.permute.xlu0 %1776
        %1778 = vrot.lane.b32.xlu0 %v1052, 72
        %v1779 = vpop.permute.xlu0 %1778
        %v1780 = vsel %vm1058, %v1777, 0
        %v1782 = vsel %vm1058, %v1779, 0
        %1784 = vmatprep.subr.mxu0 0.0
        %1785 = vmatpush1.xpose.msra.mxu0 0.0
        %1786 = vmatprep.subr.mxu0 0.0
        %1787 = vmatpush1.xpose.msra.mxu0 0.0
        %1788 = vmatprep.subr.mxu0 0.0
        %1789 = vmatpush1.xpose.msra.mxu0 0.0
        %1790 = vmatprep.subr.mxu0 0.0
        %1791 = vmatpush1.xpose.msra.mxu0 0.0
        %1792 = vmatprep.subr.mxu0 0.0
        %1793 = vmatpush1.xpose.msra.mxu0 0.0
        %1794 = vmatprep.subr.mxu0 0.0
        %1795 = vmatpush1.xpose.msra.mxu0 0.0
        %1796 = vmatprep.subr.mxu0 0.0
        %1797 = vmatpush1.xpose.msra.mxu0 0.0
        %1798 = vmatprep.subr.mxu0 0.0
        %1799 = vmatpush1.xpose.msra.mxu0 0.0
        %1800 = vmatprep.subr.mxu0 0.0
        %1801 = vmatpush1.xpose.msra.mxu0 0.0
        %1802 = vmatprep.subr.mxu0 0.0
        %1803 = vmatpush1.xpose.msra.mxu0 0.0
        %1804 = vmatprep.subr.mxu0 0.0
        %1805 = vmatpush1.xpose.msra.mxu0 0.0
        %1806 = vmatprep.subr.mxu0 0.0
        %1807 = vmatpush1.xpose.msra.mxu0 0.0
        %1808 = vmatprep.subr.mxu0 0.0
        %1809 = vmatpush1.xpose.msra.mxu0 0.0
        %1810 = vmatprep.subr.mxu0 0.0
        %1811 = vmatpush1.xpose.msra.mxu0 0.0
        %1812 = vmatprep.subr.mxu0 0.0
        %1813 = vmatpush1.xpose.msra.mxu0 0.0
        %1814 = vmatprep.subr.mxu0 0.0
        %1815 = vmatpush1.xpose.msra.mxu0 %v1782
        %1816 = vmatprep.subr.mxu0 0.0
        %1817 = vmatpush2.xpose.msra.mxu0 0.0
        %1818 = vmatprep.subr.mxu0 0.0
        %1819 = vmatpush2.xpose.msra.mxu0 0.0
        %1820 = vmatprep.subr.mxu0 0.0
        %1821 = vmatpush2.xpose.msra.mxu0 0.0
        %1822 = vmatprep.subr.mxu0 0.0
        %1823 = vmatpush2.xpose.msra.mxu0 0.0
        %1824 = vmatprep.subr.mxu0 0.0
        %1825 = vmatpush2.xpose.msra.mxu0 0.0
        %1826 = vmatprep.subr.mxu0 0.0
        %1827 = vmatpush2.xpose.msra.mxu0 0.0
        %1828 = vmatprep.subr.mxu0 0.0
        %1829 = vmatpush2.xpose.msra.mxu0 0.0
        %1830 = vmatprep.subr.mxu0 0.0
        %1831 = vmatpush2.xpose.msra.mxu0 0.0
        %1832 = vmatprep.subr.mxu0 0.0
        %1833 = vmatpush2.xpose.msra.mxu0 0.0
        %1834 = vmatprep.subr.mxu0 0.0
        %1835 = vmatpush2.xpose.msra.mxu0 0.0
        %1836 = vmatprep.subr.mxu0 0.0
        %1837 = vmatpush2.xpose.msra.mxu0 0.0
        %1838 = vmatprep.subr.mxu0 0.0
        %1839 = vmatpush2.xpose.msra.mxu0 0.0
        %1840 = vmatprep.subr.mxu0 0.0
        %1841 = vmatpush2.xpose.msra.mxu0 0.0
        %1842 = vmatprep.subr.mxu0 0.0
        %1843 = vmatpush2.xpose.msra.mxu0 0.0
        %1844 = vmatprep.subr.mxu0 0.0
        %1845 = vmatpush2.xpose.msra.mxu0 0.0
        %1846 = vmatprep.subr.mxu0 0.0
        %1847 = vmatpush2.xpose.msra.mxu0 0.0
        %1848 = vmatprep.mubr.f32.mxu0 0.0
        %1849 = vmatmul.mubr.f32.gmra.mxu0 %v1780
        %v1850 = vpop.f32.mrf.mxu0
        %v1851 = vadd.f32 0.0, %v1850
        %v1852 = vpop.f32.mrf.mxu0
        %1853 = vdwg.mxu0
        %v1854 = vsel %vm1133, %v1851, -inf
        %1855 = vmax.xlane.f32.xlu0 %v1854
        %v1856 = vpop.xlane.xlu0 %1855
        %v1857 = vsub.f32 %v1851, %v1856
        %v1858 = vmul.f32 %v1857, 1.442695
        %v1859 = vpow.pop %v1858
        %v1860 = vsel %vm1133, %v1859, 0.0
        %1861 = vadd.xlane.f32.xlu0 %v1860
        %v1862 = vpop.xlane.xlu0 %1861
        %v1863 = vrcp.pop %v1862
        %v1864 = vmul.f32 %v1859, %v1863
        %1865 = vrot.lane.b32.xlu0 %v1052, 40
        %v1866 = vpop.permute.xlu0 %1865
        %v1868 = vsel %vm1147, %v1864, 0
        %v1870 = vsel %vm1151, %v1866, 0
        %1872 = vmatprep.subr.mxu0 0.0
        %1873 = vmatpush1.msra.mxu0 0.0
        %1874 = vmatprep.subr.mxu0 0.0
        %1875 = vmatpush1.msra.mxu0 0.0
        %1876 = vmatprep.subr.mxu0 0.0
        %1877 = vmatpush1.msra.mxu0 0.0
        %1878 = vmatprep.subr.mxu0 0.0
        %1879 = vmatpush1.msra.mxu0 0.0
        %1880 = vmatprep.subr.mxu0 0.0
        %1881 = vmatpush1.msra.mxu0 0.0
        %1882 = vmatprep.subr.mxu0 0.0
        %1883 = vmatpush1.msra.mxu0 0.0
        %1884 = vmatprep.subr.mxu0 0.0
        %1885 = vmatpush1.msra.mxu0 0.0
        %1886 = vmatprep.subr.mxu0 0.0
        %1887 = vmatpush1.msra.mxu0 0.0
        %1888 = vmatprep.subr.mxu0 0.0
        %1889 = vmatpush1.msra.mxu0 0.0
        %1890 = vmatprep.subr.mxu0 0.0
        %1891 = vmatpush1.msra.mxu0 0.0
        %1892 = vmatprep.subr.mxu0 0.0
        %1893 = vmatpush1.msra.mxu0 0.0
        %1894 = vmatprep.subr.mxu0 0.0
        %1895 = vmatpush1.msra.mxu0 0.0
        %1896 = vmatprep.subr.mxu0 0.0
        %1897 = vmatpush1.msra.mxu0 0.0
        %1898 = vmatprep.subr.mxu0 0.0
        %1899 = vmatpush1.msra.mxu0 0.0
        %1900 = vmatprep.subr.mxu0 0.0
        %1901 = vmatpush1.msra.mxu0 0.0
        %1902 = vmatprep.subr.mxu0 0.0
        %1903 = vmatpush1.msra.mxu0 %v1870
        %1904 = vmatprep.subr.mxu0 0.0
        %1905 = vmatpush2.msra.mxu0 0.0
        %1906 = vmatprep.subr.mxu0 0.0
        %1907 = vmatpush2.msra.mxu0 0.0
        %1908 = vmatprep.subr.mxu0 0.0
        %1909 = vmatpush2.msra.mxu0 0.0
        %1910 = vmatprep.subr.mxu0 0.0
        %1911 = vmatpush2.msra.mxu0 0.0
        %1912 = vmatprep.subr.mxu0 0.0
        %1913 = vmatpush2.msra.mxu0 0.0
        %1914 = vmatprep.subr.mxu0 0.0
        %1915 = vmatpush2.msra.mxu0 0.0
        %1916 = vmatprep.subr.mxu0 0.0
        %1917 = vmatpush2.msra.mxu0 0.0
        %1918 = vmatprep.subr.mxu0 0.0
        %1919 = vmatpush2.msra.mxu0 0.0
        %1920 = vmatprep.subr.mxu0 0.0
        %1921 = vmatpush2.msra.mxu0 0.0
        %1922 = vmatprep.subr.mxu0 0.0
        %1923 = vmatpush2.msra.mxu0 0.0
        %1924 = vmatprep.subr.mxu0 0.0
        %1925 = vmatpush2.msra.mxu0 0.0
        %1926 = vmatprep.subr.mxu0 0.0
        %1927 = vmatpush2.msra.mxu0 0.0
        %1928 = vmatprep.subr.mxu0 0.0
        %1929 = vmatpush2.msra.mxu0 0.0
        %1930 = vmatprep.subr.mxu0 0.0
        %1931 = vmatpush2.msra.mxu0 0.0
        %1932 = vmatprep.subr.mxu0 0.0
        %1933 = vmatpush2.msra.mxu0 0.0
        %1934 = vmatprep.subr.mxu0 0.0
        %1935 = vmatpush2.msra.mxu0 0.0
        %1936 = vmatprep.mubr.f32.mxu0 0.0
        %1937 = vmatmul.mubr.f32.gmra.mxu0 %v1868
        %v1938 = vpop.f32.mrf.mxu0
        %v1939 = vadd.f32 0.0, %v1938
        %v1940 = vpop.f32.mrf.mxu0
        %1941 = vdwg.mxu0
        %v1943 = vsel %vm1058, %v1939, 0
        %1945 = vmatprep.subr.mxu0 0.0
        %1946 = vmatpush1.msra.mxu0 0.0
        %1947 = vmatprep.subr.mxu0 0.0
        %1948 = vmatpush1.msra.mxu0 0.0
        %1949 = vmatprep.subr.mxu0 0.0
        %1950 = vmatpush1.msra.mxu0 0.0
        %1951 = vmatprep.subr.mxu0 0.0
        %1952 = vmatpush1.msra.mxu0 0.0
        %1953 = vmatprep.subr.mxu0 0.0
        %1954 = vmatpush1.msra.mxu0 0.0
        %1955 = vmatprep.subr.mxu0 0.0
        %1956 = vmatpush1.msra.mxu0 0.0
        %1957 = vmatprep.subr.mxu0 0.0
        %1958 = vmatpush1.msra.mxu0 0.0
        %1959 = vmatprep.subr.mxu0 0.0
        %1960 = vmatpush1.msra.mxu0 0.0
        %1961 = vmatprep.subr.mxu0 0.0
        %1962 = vmatpush1.msra.mxu0 0.0
        %1963 = vmatprep.subr.mxu0 0.0
        %1964 = vmatpush1.msra.mxu0 0.0
        %1965 = vmatprep.subr.mxu0 0.0
        %1966 = vmatpush1.msra.mxu0 0.0
        %1967 = vmatprep.subr.mxu0 0.0
        %1968 = vmatpush1.msra.mxu0 0.0
        %1969 = vmatprep.subr.mxu0 0.0
        %1970 = vmatpush1.msra.mxu0 0.0
        %1971 = vmatprep.subr.mxu0 0.0
        %1972 = vmatpush1.msra.mxu0 0.0
        %1973 = vmatprep.subr.mxu0 0.0
        %1974 = vmatpush1.msra.mxu0 0.0
        %1975 = vmatprep.subr.mxu0 0.0
        %1976 = vmatpush1.msra.mxu0 %v928
        %1977 = vmatprep.subr.mxu0 0.0
        %1978 = vmatpush2.msra.mxu0 0.0
        %1979 = vmatprep.subr.mxu0 0.0
        %1980 = vmatpush2.msra.mxu0 0.0
        %1981 = vmatprep.subr.mxu0 0.0
        %1982 = vmatpush2.msra.mxu0 0.0
        %1983 = vmatprep.subr.mxu0 0.0
        %1984 = vmatpush2.msra.mxu0 0.0
        %1985 = vmatprep.subr.mxu0 0.0
        %1986 = vmatpush2.msra.mxu0 0.0
        %1987 = vmatprep.subr.mxu0 0.0
        %1988 = vmatpush2.msra.mxu0 0.0
        %1989 = vmatprep.subr.mxu0 0.0
        %1990 = vmatpush2.msra.mxu0 0.0
        %1991 = vmatprep.subr.mxu0 0.0
        %1992 = vmatpush2.msra.mxu0 0.0
        %1993 = vmatprep.subr.mxu0 0.0
        %1994 = vmatpush2.msra.mxu0 0.0
        %1995 = vmatprep.subr.mxu0 0.0
        %1996 = vmatpush2.msra.mxu0 0.0
        %1997 = vmatprep.subr.mxu0 0.0
        %1998 = vmatpush2.msra.mxu0 0.0
        %1999 = vmatprep.subr.mxu0 0.0
        %2000 = vmatpush2.msra.mxu0 0.0
        %2001 = vmatprep.subr.mxu0 0.0
        %2002 = vmatpush2.msra.mxu0 0.0
        %2003 = vmatprep.subr.mxu0 0.0
        %2004 = vmatpush2.msra.mxu0 0.0
        %2005 = vmatprep.subr.mxu0 0.0
        %2006 = vmatpush2.msra.mxu0 0.0
        %2007 = vmatprep.subr.mxu0 0.0
        %2008 = vmatpush2.msra.mxu0 0.0
        %2009 = vmatprep.mubr.f32.mxu0 0.0
        %2010 = vmatmul.mubr.f32.gmra.mxu0 %v1943
        %v2011 = vpop.f32.mrf.mxu0
        %v2012 = vadd.f32 0.0, %v2011
        %v2013 = vpop.f32.mrf.mxu0
        %2014 = vdwg.mxu0
        %v2015 = vadd.f32 %v1775, %v2012
        %v2017 = vlaneseq
        %v2018 = vshrl.u32 %v2017, 7
        %v2019 = vsub.s32 0, %v2018
        %v2020 = vrot.slane %v929, %v2019
        %v2022 = vadd.f32 %v2015, %v2020
        %v2023 = vadd.f32 %v915, %v2022
        %v2024 = vsel %vm946, %v2023, 0.0
        %2025 = vadd.xlane.f32.xlu0 %v2024
        %v2026 = vpop.xlane.xlu0 %2025
        %v2027 = vmul.f32 %v2026, %v950
        %v2028 = vsub.f32 %v2023, %v2027
        %v2029 = vmul.f32 %v2028, %v2028
        %v2030 = vsel %vm946, %v2029, 0.0
        %2031 = vadd.xlane.f32.xlu0 %v2030
        %v2032 = vpop.xlane.xlu0 %2031
        %v2033 = vmul.f32 %v2032, %v950
        %v2034 = vadd.f32 %v2033, 1e-05
        %v2035 = vrsqrt.pop %v2034
        %v2036 = vmul.f32 %v2028, %v2035
        %v2038 = vlaneseq
        %v2039 = vshrl.u32 %v2038, 7
        %v2040 = vsub.s32 0, %v2039
        %v2041 = vrot.slane %v930, %v2040
        %v2043 = vmul.f32 %v2036, %v2041
        %v2045 = vlaneseq
        %v2046 = vshrl.u32 %v2045, 7
        %v2047 = vsub.s32 0, %v2046
        %v2048 = vrot.slane %v931, %v2047
        %v2050 = vadd.f32 %v2043, %v2048
        %v2052 = vlaneseq
        %v2053 = vshrl.u32 %v2052, 7
        %v2054 = vsub.s32 0, %v2053
        %v2055 = vrot.slane %v936, %v2054
        %v2058 = vsel %vm981, %v2050, 0
        %2060 = vmatprep.subr.mxu0 0.0
        %2061 = vmatpush1.msra.mxu0 0.0
        %2062 = vmatprep.subr.mxu0 0.0
        %2063 = vmatpush1.msra.mxu0 0.0
        %2064 = vmatprep.subr.mxu0 0.0
        %2065 = vmatpush1.msra.mxu0 0.0
        %2066 = vmatprep.subr.mxu0 0.0
        %2067 = vmatpush1.msra.mxu0 0.0
        %2068 = vmatprep.subr.mxu0 0.0
        %2069 = vmatpush1.msra.mxu0 0.0
        %2070 = vmatprep.subr.mxu0 0.0
        %2071 = vmatpush1.msra.mxu0 0.0
        %2072 = vmatprep.subr.mxu0 0.0
        %2073 = vmatpush1.msra.mxu0 0.0
        %2074 = vmatprep.subr.mxu0 0.0
        %2075 = vmatpush1.msra.mxu0 0.0
        %2076 = vmatprep.subr.mxu0 0.0
        %2077 = vmatpush1.msra.mxu0 0.0
        %2078 = vmatprep.subr.mxu0 0.0
        %2079 = vmatpush1.msra.mxu0 0.0
        %2080 = vmatprep.subr.mxu0 0.0
        %2081 = vmatpush1.msra.mxu0 0.0
        %2082 = vmatprep.subr.mxu0 0.0
        %2083 = vmatpush1.msra.mxu0 0.0
        %2084 = vmatprep.subr.mxu0 0.0
        %2085 = vmatpush1.msra.mxu0 %v935
        %2086 = vmatprep.subr.mxu0 0.0
        %2087 = vmatpush1.msra.mxu0 %v934
        %2088 = vmatprep.subr.mxu0 0.0
        %2089 = vmatpush1.msra.mxu0 %v933
        %2090 = vmatprep.subr.mxu0 0.0
        %2091 = vmatpush1.msra.mxu0 %v932
        %2092 = vmatprep.subr.mxu0 0.0
        %2093 = vmatpush2.msra.mxu0 0.0
        %2094 = vmatprep.subr.mxu0 0.0
        %2095 = vmatpush2.msra.mxu0 0.0
        %2096 = vmatprep.subr.mxu0 0.0
        %2097 = vmatpush2.msra.mxu0 0.0
        %2098 = vmatprep.subr.mxu0 0.0
        %2099 = vmatpush2.msra.mxu0 0.0
        %2100 = vmatprep.subr.mxu0 0.0
        %2101 = vmatpush2.msra.mxu0 0.0
        %2102 = vmatprep.subr.mxu0 0.0
        %2103 = vmatpush2.msra.mxu0 0.0
        %2104 = vmatprep.subr.mxu0 0.0
        %2105 = vmatpush2.msra.mxu0 0.0
        %2106 = vmatprep.subr.mxu0 0.0
        %2107 = vmatpush2.msra.mxu0 0.0
        %2108 = vmatprep.subr.mxu0 0.0
        %2109 = vmatpush2.msra.mxu0 0.0
        %2110 = vmatprep.subr.mxu0 0.0
        %2111 = vmatpush2.msra.mxu0 0.0
        %2112 = vmatprep.subr.mxu0 0.0
        %2113 = vmatpush2.msra.mxu0 0.0
        %2114 = vmatprep.subr.mxu0 0.0
        %2115 = vmatpush2.msra.mxu0 0.0
        %2116 = vmatprep.subr.mxu0 0.0
        %2117 = vmatpush2.msra.mxu0 0.0
        %2118 = vmatprep.subr.mxu0 0.0
        %2119 = vmatpush2.msra.mxu0 0.0
        %2120 = vmatprep.subr.mxu0 0.0
        %2121 = vmatpush2.msra.mxu0 0.0
        %2122 = vmatprep.subr.mxu0 0.0
        %2123 = vmatpush2.msra.mxu0 0.0
        %2124 = vmatprep.mubr.f32.mxu0 0.0
        %2125 = vmatmul.mubr.f32.gmra.mxu0 %v2058
        %v2126 = vpop.f32.mrf.mxu0
        %v2127 = vadd.f32 %v2055, %v2126
        %v2128 = vpop.f32.mrf.mxu0
        %2129 = vdwg.mxu0
        %v2130 = vmul.f32 %v2127, %v2127
        %v2131 = vmul.f32 %v2127, %v2130
        %v2132 = vmul.f32 %v2131, 0.044715
        %v2133 = vadd.f32 %v2127, %v2132
        %v2134 = vmul.f32 %v2133, 0.7978846
        %v2135 = vtanh.pop %v2134
        %v2136 = vadd.f32 %v2135, 1.0
        %v2137 = vmul.f32 %v2136, 0.5
        %v2138 = vmul.f32 %v2127, %v2137
        %v2140 = vlaneseq
        %v2141 = vshrl.u32 %v2140, 7
        %v2142 = vsub.s32 0, %v2141
        %v2143 = vrot.slane %v945, %v2142
        %vm2145 = vcmask 523264
        %v2147 = vsel %vm2145, %v2138, 0
        %2149 = vmatprep.subr.mxu0 0.0
        %2150 = vmatpush1.msra.mxu0 0.0
        %2151 = vmatprep.subr.mxu0 0.0
        %2152 = vmatpush1.msra.mxu0 0.0
        %2153 = vmatprep.subr.mxu0 0.0
        %2154 = vmatpush1.msra.mxu0 0.0
        %2155 = vmatprep.subr.mxu0 0.0
        %2156 = vmatpush1.msra.mxu0 0.0
        %2157 = vmatprep.subr.mxu0 0.0
        %2158 = vmatpush1.msra.mxu0 0.0
        %2159 = vmatprep.subr.mxu0 0.0
        %2160 = vmatpush1.msra.mxu0 0.0
        %2161 = vmatprep.subr.mxu0 0.0
        %2162 = vmatpush1.msra.mxu0 0.0
        %2163 = vmatprep.subr.mxu0 0.0
        %2164 = vmatpush1.msra.mxu0 0.0
        %2165 = vmatprep.subr.mxu0 0.0
        %2166 = vmatpush1.msra.mxu0 %v944
        %2167 = vmatprep.subr.mxu0 0.0
        %2168 = vmatpush1.msra.mxu0 %v943
        %2169 = vmatprep.subr.mxu0 0.0
        %2170 = vmatpush1.msra.mxu0 %v942
        %2171 = vmatprep.subr.mxu0 0.0
        %2172 = vmatpush1.msra.mxu0 %v941
        %2173 = vmatprep.subr.mxu0 0.0
        %2174 = vmatpush1.msra.mxu0 %v940
        %2175 = vmatprep.subr.mxu0 0.0
        %2176 = vmatpush1.msra.mxu0 %v939
        %2177 = vmatprep.subr.mxu0 0.0
        %2178 = vmatpush1.msra.mxu0 %v938
        %2179 = vmatprep.subr.mxu0 0.0
        %2180 = vmatpush1.msra.mxu0 %v937
        %2181 = vmatprep.subr.mxu0 0.0
        %2182 = vmatpush2.msra.mxu0 0.0
        %2183 = vmatprep.subr.mxu0 0.0
        %2184 = vmatpush2.msra.mxu0 0.0
        %2185 = vmatprep.subr.mxu0 0.0
        %2186 = vmatpush2.msra.mxu0 0.0
        %2187 = vmatprep.subr.mxu0 0.0
        %2188 = vmatpush2.msra.mxu0 0.0
        %2189 = vmatprep.subr.mxu0 0.0
        %2190 = vmatpush2.msra.mxu0 0.0
        %2191 = vmatprep.subr.mxu0 0.0
        %2192 = vmatpush2.msra.mxu0 0.0
        %2193 = vmatprep.subr.mxu0 0.0
        %2194 = vmatpush2.msra.mxu0 0.0
        %2195 = vmatprep.subr.mxu0 0.0
        %2196 = vmatpush2.msra.mxu0 0.0
        %2197 = vmatprep.subr.mxu0 0.0
        %2198 = vmatpush2.msra.mxu0 0.0
        %2199 = vmatprep.subr.mxu0 0.0
        %2200 = vmatpush2.msra.mxu0 0.0
        %2201 = vmatprep.subr.mxu0 0.0
        %2202 = vmatpush2.msra.mxu0 0.0
        %2203 = vmatprep.subr.mxu0 0.0
        %2204 = vmatpush2.msra.mxu0 0.0
        %2205 = vmatprep.subr.mxu0 0.0
        %2206 = vmatpush2.msra.mxu0 0.0
        %2207 = vmatprep.subr.mxu0 0.0
        %2208 = vmatpush2.msra.mxu0 0.0
        %2209 = vmatprep.subr.mxu0 0.0
        %2210 = vmatpush2.msra.mxu0 0.0
        %2211 = vmatprep.subr.mxu0 0.0
        %2212 = vmatpush2.msra.mxu0 0.0
        %2213 = vmatprep.mubr.f32.mxu0 0.0
        %2214 = vmatmul.mubr.f32.gmra.mxu0 %v2147
        %v2215 = vpop.f32.mrf.mxu0
        %v2216 = vadd.f32 %v2143, %v2215
        %v2217 = vpop.f32.mrf.mxu0
        %2218 = vdwg.mxu0
        %v2219 = vadd.f32 %v2023, %v2216
        %v2220 = vsel %vm946, %v2219, 0.0
        %2221 = vadd.xlane.f32.xlu0 %v2220
        %v2222 = vpop.xlane.xlu0 %2221
        %v2223 = vmul.f32 %v2222, %v950
        %v2224 = vsub.f32 %v2219, %v2223
        %v2225 = vmul.f32 %v2224, %v2224
        %v2226 = vsel %vm946, %v2225, 0.0
        %2227 = vadd.xlane.f32.xlu0 %v2226
        %v2228 = vpop.xlane.xlu0 %2227
        %v2229 = vmul.f32 %v2228, %v950
        %v2230 = vadd.f32 %v2229, 1e-05
        %v2231 = vrsqrt.pop %v2230
        %v2232 = vmul.f32 %v2224, %v2231
        %v2234 = vlaneseq
        %v2235 = vshrl.u32 %v2234, 7
        %v2236 = vsub.s32 0, %v2235
        %v2237 = vrot.slane %v846, %v2236
        %v2239 = vmul.f32 %v2232, %v2237
        %v2241 = vlaneseq
        %v2242 = vshrl.u32 %v2241, 7
        %v2243 = vsub.s32 0, %v2242
        %v2244 = vrot.slane %v847, %v2243
        %v2246 = vadd.f32 %v2239, %v2244
        %vm2247 = vcmask 253952
        %2248 = vst.msk [vmem:[%s760] sm:$0x1] %vm2247, %v2246
        %s2249 = sand.u32 %s497, 1
        %s2250 = scalar_lea.sflag [#allocation3], %s2249
        %s2251 = sand.u32 %s497, 1
        %s2252 = scalar_lea.vmem [#allocation2], %s2251
        // Predicated region
        $region89: #{tpu_custom_call.1} parent=87 // pred_check
          %p2253 = pneg %p507
        $region90: #{tpu_custom_call.1} parent=87 // pred_check_branch
          %2255 = sbr.rel (%p2253) target = $region92
        $region91: #{tpu_custom_call.1} parent=87 // pred_region
          %s2257 = ssub.s32 16, 16
          %2258 = vsyncadd %s2250, %s2257
          %s2259 = smul.addr %s35, 2
          %s2260 = sadd.s32 %s36, %s2259
          %s2261 = smul.addr %s2260, 16
          %s2262 = scalar_lea.hbm %s17, %s2261
          %s2264 = sshll.u32 %s2252, 4
          %s2265 = int_to_ptr.vmem [resolvable:$true] %s2264
          %2267 = dma.vmem_to_hbm [thread:$0]  %s2265, 16, %s2262, %s2250
        $region92: #{tpu_custom_call.1} parent=87 // pred_fallthru
          _
      $region88: #{tpu_custom_call.1} parent=5 // pred_fallthru
        _
      %p2268 = scmp.le.s32.totalorder 2, %s26
      // Predicated region
      $region93: #{tpu_custom_call.1} parent=5 // pred_check
        %p2269 = pneg %p2268
      $region94: #{tpu_custom_call.1} parent=5 // pred_check_branch
        %2271 = sbr.rel (%p2269) target = $region96
      $region95: #{tpu_custom_call.1} parent=5 // pred_region
        %s2272 = ssub.s32 %s26, 2
        // Predicated region
        $region97: #{tpu_custom_call.1} parent=95 // pred_check
          %p2273 = pneg %p513
        $region98: #{tpu_custom_call.1} parent=95 // pred_check_branch
          %2275 = sbr.rel (%p2273) target = $region100
        $region99: #{tpu_custom_call.1} parent=95 // pred_region
          %s2276 = sand.u32 %s498, 1
          %s2277 = scalar_lea.sflag [#allocation3], %s2276
          %s2278 = sand.u32 %s498, 1
          %s2279 = scalar_lea.vmem [#allocation2], %s2278
          %2280 = dma.done %s2277, 16
        $region100: #{tpu_custom_call.1} parent=95 // pred_fallthru
          _
      $region96: #{tpu_custom_call.1} parent=5 // pred_fallthru
        _
    $region6: #{tpu_custom_call.1} parent=1 // loop_footer
      %s30 = sadd.s32 1, %s26
    $region7: #{tpu_custom_call.1} parent=1 // loop_footer_branch
      %25 = sbr.rel target = $region3
    $region8: #{tpu_custom_call.1} parent=1 // loop_exit
      _
    %2281 = vsyncpa [#allocation3], 1
    %s2282 = scalar_lea.sflag [#allocation3], 1
    %2283 = vsyncpa %s2282, 1

</llo_original>
